<compile_context>
chip_gen: v7x
topology: tpu7x:2x2x1
jax: 0.10.0
libtpu: 0.0.40
codegen_flags: <defaults>
</compile_context>

<pallas_src>
import jax
import jax.numpy as jnp
import numpy as np
from jax import lax
from jax.experimental import pallas as pl
from jax.experimental.pallas import tpu as pltpu


# ------------------------------ fused kernel --------------------------------

def _make_fused_kernel(H, W, C, O):
    HW = H * W

    def build_tap_slab(slab_ref, act, masks):
        """Write the 9 shifted + zero-padded 3x3 taps of `act` ((C,HW) f32) into the
        (9C, HW) f32 scratch slab; row block k*C:(k+1)*C holds tap k = ky*3+kx."""
        for ky in range(3):
            for kx in range(3):
                k = ky * 3 + kx
                s = (ky - 1) * W + (kx - 1)               # flat source shift
                if s == 0:
                    tap = act                              # centre tap: always in-bounds
                else:
                    # tap[j] = act[j+s]; taps that would cross the image border (incl.
                    # the flat-roll wrap) are zeroed by the resident mask row, which
                    # reproduces the conv's zero padding exactly.
                    tap = pltpu.roll(act, shift=(-s) % HW, axis=1) * masks[k:k + 1, :]
                slab_ref[k * C:(k + 1) * C, :] = tap

    def kernel(w_off_ref, w_reg_ref, b_ref, m_ref, grid_ref,
               xflat_ref, ximg_ref, o_ref, slab_off, slab_reg):
        # w_off_ref: (2C, 9C) bf16   w_reg_ref: (O, 9C) bf16   b_ref: (O, 1) f32
        # m_ref:     (9, HW)  f32    grid_ref:  (2, HW)  f32
        # xflat_ref: (C, HW)  bf16   ximg_ref:  (C, H, W) bf16 o_ref: (O, HW) f32
        # slab_off / slab_reg: (9C, HW) f32 VMEM scratch
        masks = m_ref[...]
        xf = xflat_ref[...].astype(jnp.float32)

        # ---- offset conv: Conv2d(C, 2C, 3, padding=1, bias=False), ONE K=9C matmul --
        build_tap_slab(slab_off, xf, masks)
        offset = jnp.dot(w_off_ref[...], slab_off[...].astype(jnp.bfloat16),
                         preferred_element_type=jnp.float32)              # (2C, HW) f32

        # ---- F.grid_sample (bilinear, zeros padding, align_corners=False) -----------
        # Module quirk kept verbatim: grid[...,0] (x / width coord) = offset_h + grid_h,
        # grid[...,1] (y / height coord) = offset_w + grid_w.
        gh = grid_ref[0:1, :]                        # grid_h (varies along H)  (1, HW)
        gw = grid_ref[1:2, :]                        # grid_w (varies along W)
        off_w = offset[0:C, :]                       # first C output channels  (C, HW)
        off_h = offset[C:2 * C, :]
        cx = off_h + gh
        cy = off_w + gw
        ix = (cx + 1.0) * (0.5 * W) - 0.5            # align_corners=False unnormalize
        iy = (cy + 1.0) * (0.5 * H) - 0.5

        # Separable bilinear via hat functions: weight of source row h / col w is
        # relu(1 - |coord - index|); out-of-image indices get weight 0 (zeros padding).
        iota_h = lax.broadcasted_iota(jnp.int32, (1, H, HW), 1).astype(jnp.float32)
        iota_w = lax.broadcasted_iota(jnp.int32, (1, W, HW), 1).astype(jnp.float32)
        wy = jnp.maximum(0.0, 1.0 - jnp.abs(iota_h - iy[:, None, :]))     # (C, H, HW)
        wx = jnp.maximum(0.0, 1.0 - jnp.abs(iota_w - ix[:, None, :]))     # (C, W, HW)

        img = ximg_ref[...].astype(jnp.float32)                            # (C, H, W)
        # Horizontal interp as a small batched matmul (K=W), vertical interp as a
        # multiply + sublane reduce.  f32 operands / f32 accumulation: a deliberate
        # precision choice (default MXU pass precision is plenty for this use).
        tmp = jnp.einsum('chw,cwj->chj', img, wx,
                         preferred_element_type=jnp.float32)               # (C, H, HW)
        sampled = jnp.sum(wy * tmp, axis=1)                                # (C, HW) f32

        # ---- regular conv: Conv2d(C, O, 3, padding=1) + bias, ONE K=9C matmul -------
        build_tap_slab(slab_reg, sampled, masks)
        out = jnp.dot(w_reg_ref[...], slab_reg[...].astype(jnp.bfloat16),
                      preferred_element_type=jnp.float32)                  # (O, HW) f32
        o_ref[...] = out + b_ref[...]

    return kernel


# ------------------------------ python wrapper -------------------------------

def conv2d_deformable_forward(x, offset_weight, reg_weight, reg_bias):
    """Conv2dDeformable.forward as one fused Pallas kernel per batch element."""
    N, C, H, W = x.shape
    HW = H * W
    O = reg_weight.shape[0]

    # (out, C, 3, 3) -> (out, 9C): column index k*C + c with k = ky*3 + kx (tap-major),
    # matching the row layout of the in-kernel tap slab.  bf16 MXU operands.
    def flatten_w(w):
        o = w.shape[0]
        w2 = jnp.transpose(w.reshape(o, C, 9), (0, 2, 1)).reshape(o, 9 * C)
        return w2.astype(jnp.bfloat16)

    w_off2 = flatten_w(offset_weight)                         # (2C, 9C)
    w_reg2 = flatten_w(reg_weight)                            # (O, 9C)
    b_col = reg_bias.reshape(O, 1).astype(jnp.float32)

    # Per-tap zero-padding masks (constants; resident in VMEM).
    yy, xx = jnp.meshgrid(jnp.arange(H), jnp.arange(W), indexing="ij")
    yy = yy.reshape(1, HW)
    xx = xx.reshape(1, HW)
    rows = []
    for ky in range(3):
        for kx in range(3):
            dy, dx = ky - 1, kx - 1
            valid = ((yy + dy >= 0) & (yy + dy <= H - 1) &
                     (xx + dx >= 0) & (xx + dx <= W - 1))
            rows.append(valid.astype(jnp.float32))
    masks = jnp.concatenate(rows, axis=0)                     # (9, HW)

    # np.meshgrid(linspace(-1,1,W), linspace(-1,1,H)): grid_w varies along W, grid_h
    # along H.  Packed as one small resident (2, HW) table: row 0 = grid_h, 1 = grid_w.
    lin_w = jnp.linspace(-1.0, 1.0, W, dtype=jnp.float32)
    lin_h = jnp.linspace(-1.0, 1.0, H, dtype=jnp.float32)
    grid_h = jnp.broadcast_to(lin_h[:, None], (H, W)).reshape(1, HW)
    grid_w = jnp.broadcast_to(lin_w[None, :], (H, W)).reshape(1, HW)
    grid2 = jnp.concatenate([grid_h, grid_w], axis=0)         # (2, HW)

    # Streamed activations in bf16 (halved DMA).  x is passed both in the lane-dense
    # flat layout (for the conv taps) and in (C,H,W) layout (for the horizontal
    # interp); both blocks are tiny here.
    x_bf = x.astype(jnp.bfloat16)
    x_flat = x_bf.reshape(N, C, HW)

    out = pl.pallas_call(
        _make_fused_kernel(H, W, C, O),
        out_shape=jax.ShapeDtypeStruct((N, O, HW), jnp.float32),
        grid_spec=pltpu.PrefetchScalarGridSpec(
            num_scalar_prefetch=0,
            grid=(N,),
            in_specs=[
                pl.BlockSpec((2 * C, 9 * C), lambda n: (0, 0)),         # offset weights
                pl.BlockSpec((O, 9 * C), lambda n: (0, 0)),             # regular weights
                pl.BlockSpec((O, 1), lambda n: (0, 0)),                 # bias
                pl.BlockSpec((9, HW), lambda n: (0, 0)),                # tap masks
                pl.BlockSpec((2, HW), lambda n: (0, 0)),                # base grid
                pl.BlockSpec((None, C, HW), lambda n: (n, 0, 0)),       # x (flat, bf16)
                pl.BlockSpec((None, C, H, W), lambda n: (n, 0, 0, 0)),  # x (image, bf16)
            ],
            out_specs=pl.BlockSpec((None, O, HW), lambda n: (n, 0, 0)),
            scratch_shapes=[
                pltpu.VMEM((9 * C, HW), jnp.float32),    # offset-conv tap slab
                pltpu.VMEM((9 * C, HW), jnp.float32),    # regular-conv tap slab
            ],
        ),
        compiler_params=pltpu.CompilerParams(
            dimension_semantics=("parallel",),           # N=2 -> both v7x TCs busy
            vmem_limit_bytes=32 * 1024 * 1024,           # explicit budget (v7x: 64 MiB)
        ),
    )(w_off2, w_reg2, b_col, masks, grid2, x_flat, x_bf)

    # TODO(synk): for N == 1 on v7x, add a second parallel grid axis (channel/HW tiles)
    # so both TensorCores get work.
    # TODO(synk): for production-sized C*H*W, add a C-reduction grid axis ("arbitrary")
    # with an f32 accumulator + pl.when init/finalize instead of one (C,HW) block/step.
    return out.reshape(N, O, H, W)


# ------------------------- pure-JAX reference (check) ------------------------

def _reference_forward(x, offset_weight, reg_weight, reg_bias):
    N, C, H, W = x.shape
    dn = ("NCHW", "OIHW", "NCHW")
    hi = lax.Precision.HIGHEST
    offset = lax.conv_general_dilated(x, offset_weight, (1, 1), "SAME",
                                      dimension_numbers=dn, precision=hi)
    off_w = offset[:, :C].reshape(N * C, H, W)
    off_h = offset[:, C:].reshape(N * C, H, W)
    lin_w = jnp.linspace(-1.0, 1.0, W, dtype=jnp.float32)
    lin_h = jnp.linspace(-1.0, 1.0, H, dtype=jnp.float32)
    grid_w = jnp.broadcast_to(lin_w[None, :], (H, W))
    grid_h = jnp.broadcast_to(lin_h[:, None], (H, W))
    cx = off_h + grid_h[None]          # x (width) coordinate  (module quirk)
    cy = off_w + grid_w[None]          # y (height) coordinate
    ix = (cx + 1.0) * 0.5 * W - 0.5
    iy = (cy + 1.0) * 0.5 * H - 0.5
    x0 = jnp.floor(ix)
    y0 = jnp.floor(iy)
    wx1 = ix - x0
    wy1 = iy - y0
    xf = x.reshape(N * C, H * W)

    def corner(yc, xc, wgt):
        yi = yc.astype(jnp.int32)
        xi = xc.astype(jnp.int32)
        valid = (yi >= 0) & (yi < H) & (xi >= 0) & (xi < W)
        idx = jnp.clip(yi, 0, H - 1) * W + jnp.clip(xi, 0, W - 1)
        g = jnp.take_along_axis(xf, idx.reshape(N * C, H * W),
                                axis=1).reshape(N * C, H, W)
        return jnp.where(valid, g, 0.0) * wgt

    samp = (corner(y0, x0, (1 - wy1) * (1 - wx1)) +
            corner(y0, x0 + 1, (1 - wy1) * wx1) +
            corner(y0 + 1, x0, wy1 * (1 - wx1)) +
            corner(y0 + 1, x0 + 1, wy1 * wx1)).reshape(N, C, H, W)
    out = lax.conv_general_dilated(samp, reg_weight, (1, 1), "SAME",
                                   dimension_numbers=dn, precision=hi)
    return out + reg_bias[None, :, None, None]


if __name__ == "__main__":
    key = jax.random.PRNGKey(0)
    k1, k2, k3, k4 = jax.random.split(key, 4)

    N, C, H, W, O = 2, 4, 16, 16, 8
    x = jax.random.normal(k1, (N, C, H, W), jnp.float32)

    # offset_filter: Conv2d(C, 2C, 3, padding=1, bias=False), weight ~ N(0, 0.0005)
    offset_weight = 0.0005 * jax.random.normal(k2, (2 * C, C, 3, 3), jnp.float32)

    # regular_filter: Conv2d(C, O, 3, padding=1) with bias (synthetic init)
    fan_in = C * 9
    bound = float(1.0 / (fan_in ** 0.5))
    reg_weight = jax.random.uniform(k3, (O, C, 3, 3), jnp.float32, -bound, bound)
    reg_bias = jax.random.uniform(k4, (O,), jnp.float32, -bound, bound)

    out = jax.jit(conv2d_deformable_forward)(x, offset_weight, reg_weight, reg_bias)
    jax.block_until_ready(out)
    assert out.shape == (N, O, H, W) and out.dtype == jnp.float32

    ref = jax.jit(_reference_forward)(x, offset_weight, reg_weight, reg_bias)
    np.testing.assert_allclose(np.asarray(out), np.asarray(ref), rtol=5e-2, atol=5e-2)
    print("KERNEL_OK")
</pallas_src>

<mosaic_0001>
module attributes {stable_mosaic.version = 11 : i64} {
  func.func @kernel(%arg0: i32, %arg1: memref<8x36xbf16, #tpu.memory_space<vmem>>, %arg2: memref<8x36xbf16, #tpu.memory_space<vmem>>, %arg3: memref<8x1xf32, #tpu.memory_space<vmem>>, %arg4: memref<9x256xf32, #tpu.memory_space<vmem>>, %arg5: memref<2x256xf32, #tpu.memory_space<vmem>>, %arg6: memref<1x4x256xbf16, #tpu.memory_space<vmem>>, %arg7: memref<1x4x16x16xbf16, #tpu.memory_space<vmem>>, %arg8: memref<1x8x256xf32, #tpu.memory_space<vmem>>, %arg9: memref<36x256xf32, #tpu.memory_space<vmem>>, %arg10: memref<36x256xf32, #tpu.memory_space<vmem>>) attributes {dimension_semantics = [#tpu.dimension_semantics<parallel>], iteration_bounds = array<i64: 2>, scalar_prefetch = 0 : i64, scratch_operands = 2 : i64, tpu.core_type = #tpu.core_type<tc>, window_params = [{pipeline_mode = #tpu.pipeline_mode<synchronous>, transform_indices = @transform_0, window_bounds = array<i64: 8, 36>}, {pipeline_mode = #tpu.pipeline_mode<synchronous>, transform_indices = @transform_1, window_bounds = array<i64: 8, 36>}, {pipeline_mode = #tpu.pipeline_mode<synchronous>, transform_indices = @transform_2, window_bounds = array<i64: 8, 1>}, {pipeline_mode = #tpu.pipeline_mode<synchronous>, transform_indices = @transform_3, window_bounds = array<i64: 9, 256>}, {pipeline_mode = #tpu.pipeline_mode<synchronous>, transform_indices = @transform_4, window_bounds = array<i64: 2, 256>}, {transform_indices = @transform_5, window_bounds = array<i64: 1, 4, 256>}, {transform_indices = @transform_6, window_bounds = array<i64: 1, 4, 16, 16>}, {transform_indices = @transform_7, window_bounds = array<i64: 1, 8, 256>}]} {
    %c0 = arith.constant 0 : index
    %c0_0 = arith.constant 0 : index
    %0 = vector.load %arg4[%c0, %c0_0] : memref<9x256xf32, #tpu.memory_space<vmem>>, vector<9x256xf32>
    %c0_1 = arith.constant 0 : index
    %c0_2 = arith.constant 0 : index
    %c0_3 = arith.constant 0 : index
    %1 = vector.load %arg6[%c0_1, %c0_2, %c0_3] : memref<1x4x256xbf16, #tpu.memory_space<vmem>>, vector<1x4x256xbf16>
    %2 = vector.shape_cast %1 : vector<1x4x256xbf16> to vector<4x256xbf16>
    %3 = arith.extf %2 : vector<4x256xbf16> to vector<4x256xf32>
    %c17_i32 = arith.constant 17 : i32
    %4 = tpu.dynamic_rotate %3 by %c17_i32 dim 1 : vector<4x256xf32>, i32 -> vector<4x256xf32>
    %5 = vector.extract_strided_slice %0 {offsets = [0, 0], sizes = [1, 256], strides = [1, 1]} : vector<9x256xf32> to vector<1x256xf32>
    %6 = vector.broadcast %5 : vector<1x256xf32> to vector<4x256xf32>
    %7 = arith.mulf %4, %6 : vector<4x256xf32>
    %c0_4 = arith.constant 0 : index
    %c0_5 = arith.constant 0 : index
    %8 = vector.load %arg9[%c0_4, %c0_5] : memref<36x256xf32, #tpu.memory_space<vmem>>, vector<4x256xf32>
    tpu.vector_store %arg9[%c0_4, %c0_5], %7 {strides = array<i32>} : memref<36x256xf32, #tpu.memory_space<vmem>>, vector<4x256xf32>,
    %c16_i32 = arith.constant 16 : i32
    %9 = tpu.dynamic_rotate %3 by %c16_i32 dim 1 : vector<4x256xf32>, i32 -> vector<4x256xf32>
    %10 = vector.extract_strided_slice %0 {offsets = [1, 0], sizes = [1, 256], strides = [1, 1]} : vector<9x256xf32> to vector<1x256xf32>
    %11 = vector.broadcast %10 : vector<1x256xf32> to vector<4x256xf32>
    %12 = arith.mulf %9, %11 : vector<4x256xf32>
    %c4 = arith.constant 4 : index
    %c0_6 = arith.constant 0 : index
    %13 = vector.load %arg9[%c4, %c0_6] : memref<36x256xf32, #tpu.memory_space<vmem>>, vector<4x256xf32>
    tpu.vector_store %arg9[%c4, %c0_6], %12 {strides = array<i32>} : memref<36x256xf32, #tpu.memory_space<vmem>>, vector<4x256xf32>,
    %c15_i32 = arith.constant 15 : i32
    %14 = tpu.dynamic_rotate %3 by %c15_i32 dim 1 : vector<4x256xf32>, i32 -> vector<4x256xf32>
    %15 = vector.extract_strided_slice %0 {offsets = [2, 0], sizes = [1, 256], strides = [1, 1]} : vector<9x256xf32> to vector<1x256xf32>
    %16 = vector.broadcast %15 : vector<1x256xf32> to vector<4x256xf32>
    %17 = arith.mulf %14, %16 : vector<4x256xf32>
    %c8 = arith.constant 8 : index
    %c0_7 = arith.constant 0 : index
    %18 = vector.load %arg9[%c8, %c0_7] : memref<36x256xf32, #tpu.memory_space<vmem>>, vector<4x256xf32>
    tpu.vector_store %arg9[%c8, %c0_7], %17 {strides = array<i32>} : memref<36x256xf32, #tpu.memory_space<vmem>>, vector<4x256xf32>,
    %c1_i32 = arith.constant 1 : i32
    %19 = tpu.dynamic_rotate %3 by %c1_i32 dim 1 : vector<4x256xf32>, i32 -> vector<4x256xf32>
    %20 = vector.extract_strided_slice %0 {offsets = [3, 0], sizes = [1, 256], strides = [1, 1]} : vector<9x256xf32> to vector<1x256xf32>
    %21 = vector.broadcast %20 : vector<1x256xf32> to vector<4x256xf32>
    %22 = arith.mulf %19, %21 : vector<4x256xf32>
    %c12 = arith.constant 12 : index
    %c0_8 = arith.constant 0 : index
    %23 = vector.load %arg9[%c12, %c0_8] : memref<36x256xf32, #tpu.memory_space<vmem>>, vector<4x256xf32>
    tpu.vector_store %arg9[%c12, %c0_8], %22 {strides = array<i32>} : memref<36x256xf32, #tpu.memory_space<vmem>>, vector<4x256xf32>,
    %c16 = arith.constant 16 : index
    %c0_9 = arith.constant 0 : index
    %24 = vector.load %arg9[%c16, %c0_9] : memref<36x256xf32, #tpu.memory_space<vmem>>, vector<4x256xf32>
    tpu.vector_store %arg9[%c16, %c0_9], %3 {strides = array<i32>} : memref<36x256xf32, #tpu.memory_space<vmem>>, vector<4x256xf32>,
    %c255_i32 = arith.constant 255 : i32
    %25 = tpu.dynamic_rotate %3 by %c255_i32 dim 1 : vector<4x256xf32>, i32 -> vector<4x256xf32>
    %26 = vector.extract_strided_slice %0 {offsets = [5, 0], sizes = [1, 256], strides = [1, 1]} : vector<9x256xf32> to vector<1x256xf32>
    %27 = vector.broadcast %26 : vector<1x256xf32> to vector<4x256xf32>
    %28 = arith.mulf %25, %27 : vector<4x256xf32>
    %c20 = arith.constant 20 : index
    %c0_10 = arith.constant 0 : index
    %29 = vector.load %arg9[%c20, %c0_10] : memref<36x256xf32, #tpu.memory_space<vmem>>, vector<4x256xf32>
    tpu.vector_store %arg9[%c20, %c0_10], %28 {strides = array<i32>} : memref<36x256xf32, #tpu.memory_space<vmem>>, vector<4x256xf32>,
    %c241_i32 = arith.constant 241 : i32
    %30 = tpu.dynamic_rotate %3 by %c241_i32 dim 1 : vector<4x256xf32>, i32 -> vector<4x256xf32>
    %31 = vector.extract_strided_slice %0 {offsets = [6, 0], sizes = [1, 256], strides = [1, 1]} : vector<9x256xf32> to vector<1x256xf32>
    %32 = vector.broadcast %31 : vector<1x256xf32> to vector<4x256xf32>
    %33 = arith.mulf %30, %32 : vector<4x256xf32>
    %c24 = arith.constant 24 : index
    %c0_11 = arith.constant 0 : index
    %34 = vector.load %arg9[%c24, %c0_11] : memref<36x256xf32, #tpu.memory_space<vmem>>, vector<4x256xf32>
    tpu.vector_store %arg9[%c24, %c0_11], %33 {strides = array<i32>} : memref<36x256xf32, #tpu.memory_space<vmem>>, vector<4x256xf32>,
    %c240_i32 = arith.constant 240 : i32
    %35 = tpu.dynamic_rotate %3 by %c240_i32 dim 1 : vector<4x256xf32>, i32 -> vector<4x256xf32>
    %36 = vector.extract_strided_slice %0 {offsets = [7, 0], sizes = [1, 256], strides = [1, 1]} : vector<9x256xf32> to vector<1x256xf32>
    %37 = vector.broadcast %36 : vector<1x256xf32> to vector<4x256xf32>
    %38 = arith.mulf %35, %37 : vector<4x256xf32>
    %c28 = arith.constant 28 : index
    %c0_12 = arith.constant 0 : index
    %39 = vector.load %arg9[%c28, %c0_12] : memref<36x256xf32, #tpu.memory_space<vmem>>, vector<4x256xf32>
    tpu.vector_store %arg9[%c28, %c0_12], %38 {strides = array<i32>} : memref<36x256xf32, #tpu.memory_space<vmem>>, vector<4x256xf32>,
    %c239_i32 = arith.constant 239 : i32
    %40 = tpu.dynamic_rotate %3 by %c239_i32 dim 1 : vector<4x256xf32>, i32 -> vector<4x256xf32>
    %41 = vector.extract_strided_slice %0 {offsets = [8, 0], sizes = [1, 256], strides = [1, 1]} : vector<9x256xf32> to vector<1x256xf32>
    %42 = vector.broadcast %41 : vector<1x256xf32> to vector<4x256xf32>
    %43 = arith.mulf %40, %42 : vector<4x256xf32>
    %c32 = arith.constant 32 : index
    %c0_13 = arith.constant 0 : index
    %44 = vector.load %arg9[%c32, %c0_13] : memref<36x256xf32, #tpu.memory_space<vmem>>, vector<4x256xf32>
    tpu.vector_store %arg9[%c32, %c0_13], %43 {strides = array<i32>} : memref<36x256xf32, #tpu.memory_space<vmem>>, vector<4x256xf32>,
    %c0_14 = arith.constant 0 : index
    %c0_15 = arith.constant 0 : index
    %45 = vector.load %arg1[%c0_14, %c0_15] : memref<8x36xbf16, #tpu.memory_space<vmem>>, vector<8x36xbf16>
    %c0_16 = arith.constant 0 : index
    %c0_17 = arith.constant 0 : index
    %46 = vector.load %arg9[%c0_16, %c0_17] : memref<36x256xf32, #tpu.memory_space<vmem>>, vector<36x256xf32>
    %47 = arith.truncf %46 : vector<36x256xf32> to vector<36x256xbf16>
    %cst = arith.constant dense<0.000000e+00> : vector<8x256xf32>
    %48 = tpu.matmul %45, %47, %cst {dimension_numbers = #tpu.dot_dimension_numbers<[1], [0], [0], [1], [0, 0, 1, 1], [], []>} : vector<8x36xbf16>, vector<36x256xbf16>, vector<8x256xf32> -> vector<8x256xf32>
    %c0_18 = arith.constant 0 : index
    %c0_19 = arith.constant 0 : index
    %49 = vector.load %arg5[%c0_18, %c0_19] : memref<2x256xf32, #tpu.memory_space<vmem>>, vector<1x256xf32>
    %c1 = arith.constant 1 : index
    %c0_20 = arith.constant 0 : index
    %50 = vector.load %arg5[%c1, %c0_20] : memref<2x256xf32, #tpu.memory_space<vmem>>, vector<1x256xf32>
    %51 = vector.extract_strided_slice %48 {offsets = [0, 0], sizes = [4, 256], strides = [1, 1]} : vector<8x256xf32> to vector<4x256xf32>
    %52 = vector.extract_strided_slice %48 {offsets = [4, 0], sizes = [4, 256], strides = [1, 1]} : vector<8x256xf32> to vector<4x256xf32>
    %53 = vector.broadcast %49 : vector<1x256xf32> to vector<4x256xf32>
    %54 = arith.addf %52, %53 : vector<4x256xf32>
    %55 = vector.broadcast %50 : vector<1x256xf32> to vector<4x256xf32>
    %56 = arith.addf %51, %55 : vector<4x256xf32>
    %cst_21 = arith.constant 1.000000e+00 : f32
    %57 = vector.broadcast %cst_21 : f32 to vector<4x256xf32>
    %58 = arith.addf %54, %57 : vector<4x256xf32>
    %cst_22 = arith.constant 8.000000e+00 : f32
    %59 = vector.broadcast %cst_22 : f32 to vector<4x256xf32>
    %60 = arith.mulf %58, %59 : vector<4x256xf32>
    %cst_23 = arith.constant 5.000000e-01 : f32
    %61 = vector.broadcast %cst_23 : f32 to vector<4x256xf32>
    %62 = arith.subf %60, %61 : vector<4x256xf32>
    %cst_24 = arith.constant 1.000000e+00 : f32
    %63 = vector.broadcast %cst_24 : f32 to vector<4x256xf32>
    %64 = arith.addf %56, %63 : vector<4x256xf32>
    %cst_25 = arith.constant 8.000000e+00 : f32
    %65 = vector.broadcast %cst_25 : f32 to vector<4x256xf32>
    %66 = arith.mulf %64, %65 : vector<4x256xf32>
    %cst_26 = arith.constant 5.000000e-01 : f32
    %67 = vector.broadcast %cst_26 : f32 to vector<4x256xf32>
    %68 = arith.subf %66, %67 : vector<4x256xf32>
    %69 = tpu.iota {dimensions = array<i32: 1>} : vector<1x16x256xi32>
    %70 = arith.sitofp %69 : vector<1x16x256xi32> to vector<1x16x256xf32>
    %71 = tpu.iota {dimensions = array<i32: 1>} : vector<1x16x256xi32>
    %72 = arith.sitofp %71 : vector<1x16x256xi32> to vector<1x16x256xf32>
    %73 = vector.shape_cast %68 : vector<4x256xf32> to vector<4x1x256xf32>
    %74 = vector.broadcast %70 : vector<1x16x256xf32> to vector<4x16x256xf32>
    %75 = vector.broadcast %73 : vector<4x1x256xf32> to vector<4x16x256xf32>
    %76 = arith.subf %74, %75 : vector<4x16x256xf32>
    %77 = math.absf %76 : vector<4x16x256xf32>
    %cst_27 = arith.constant 1.000000e+00 : f32
    %78 = vector.broadcast %cst_27 : f32 to vector<4x16x256xf32>
    %79 = arith.subf %78, %77 : vector<4x16x256xf32>
    %cst_28 = arith.constant 0.000000e+00 : f32
    %80 = vector.broadcast %cst_28 : f32 to vector<4x16x256xf32>
    %81 = arith.maximumf %80, %79 : vector<4x16x256xf32>
    %82 = vector.shape_cast %62 : vector<4x256xf32> to vector<4x1x256xf32>
    %83 = vector.broadcast %72 : vector<1x16x256xf32> to vector<4x16x256xf32>
    %84 = vector.broadcast %82 : vector<4x1x256xf32> to vector<4x16x256xf32>
    %85 = arith.subf %83, %84 : vector<4x16x256xf32>
    %86 = math.absf %85 : vector<4x16x256xf32>
    %cst_29 = arith.constant 1.000000e+00 : f32
    %87 = vector.broadcast %cst_29 : f32 to vector<4x16x256xf32>
    %88 = arith.subf %87, %86 : vector<4x16x256xf32>
    %cst_30 = arith.constant 0.000000e+00 : f32
    %89 = vector.broadcast %cst_30 : f32 to vector<4x16x256xf32>
    %90 = arith.maximumf %89, %88 : vector<4x16x256xf32>
    %c0_31 = arith.constant 0 : index
    %c0_32 = arith.constant 0 : index
    %c0_33 = arith.constant 0 : index
    %c0_34 = arith.constant 0 : index
    %91 = vector.load %arg7[%c0_31, %c0_32, %c0_33, %c0_34] : memref<1x4x16x16xbf16, #tpu.memory_space<vmem>>, vector<1x4x16x16xbf16>
    %92 = vector.shape_cast %91 : vector<1x4x16x16xbf16> to vector<4x16x16xbf16>
    %93 = arith.extf %92 : vector<4x16x16xbf16> to vector<4x16x16xf32>
    "tpu.trace_start"() <{level = 10 : i32, message = "chw,cwj->chj"}> : () -> ()
    %cst_35 = arith.constant dense<0.000000e+00> : vector<4x16x256xf32>
    %94 = tpu.matmul %93, %90, %cst_35 {dimension_numbers = #tpu.dot_dimension_numbers<[2], [1], [1], [2], [0, 0, 0, 1, 1, 2], [0], [0]>} : vector<4x16x16xf32>, vector<4x16x256xf32>, vector<4x16x256xf32> -> vector<4x16x256xf32>
    "tpu.trace_stop"() : () -> ()
    %95 = arith.mulf %81, %94 : vector<4x16x256xf32>
    %cst_36 = arith.constant dense<0.000000e+00> : vector<4x256xf32>
    %96 = vector.multi_reduction <add>, %95, %cst_36 [1] : vector<4x16x256xf32> to vector<4x256xf32>
    %c17_i32_37 = arith.constant 17 : i32
    %97 = tpu.dynamic_rotate %96 by %c17_i32_37 dim 1 : vector<4x256xf32>, i32 -> vector<4x256xf32>
    %98 = vector.extract_strided_slice %0 {offsets = [0, 0], sizes = [1, 256], strides = [1, 1]} : vector<9x256xf32> to vector<1x256xf32>
    %99 = vector.broadcast %98 : vector<1x256xf32> to vector<4x256xf32>
    %100 = arith.mulf %97, %99 : vector<4x256xf32>
    %c0_38 = arith.constant 0 : index
    %c0_39 = arith.constant 0 : index
    %101 = vector.load %arg10[%c0_38, %c0_39] : memref<36x256xf32, #tpu.memory_space<vmem>>, vector<4x256xf32>
    tpu.vector_store %arg10[%c0_38, %c0_39], %100 {strides = array<i32>} : memref<36x256xf32, #tpu.memory_space<vmem>>, vector<4x256xf32>,
    %c16_i32_40 = arith.constant 16 : i32
    %102 = tpu.dynamic_rotate %96 by %c16_i32_40 dim 1 : vector<4x256xf32>, i32 -> vector<4x256xf32>
    %103 = vector.extract_strided_slice %0 {offsets = [1, 0], sizes = [1, 256], strides = [1, 1]} : vector<9x256xf32> to vector<1x256xf32>
    %104 = vector.broadcast %103 : vector<1x256xf32> to vector<4x256xf32>
    %105 = arith.mulf %102, %104 : vector<4x256xf32>
    %c4_41 = arith.constant 4 : index
    %c0_42 = arith.constant 0 : index
    %106 = vector.load %arg10[%c4_41, %c0_42] : memref<36x256xf32, #tpu.memory_space<vmem>>, vector<4x256xf32>
    tpu.vector_store %arg10[%c4_41, %c0_42], %105 {strides = array<i32>} : memref<36x256xf32, #tpu.memory_space<vmem>>, vector<4x256xf32>,
    %c15_i32_43 = arith.constant 15 : i32
    %107 = tpu.dynamic_rotate %96 by %c15_i32_43 dim 1 : vector<4x256xf32>, i32 -> vector<4x256xf32>
    %108 = vector.extract_strided_slice %0 {offsets = [2, 0], sizes = [1, 256], strides = [1, 1]} : vector<9x256xf32> to vector<1x256xf32>
    %109 = vector.broadcast %108 : vector<1x256xf32> to vector<4x256xf32>
    %110 = arith.mulf %107, %109 : vector<4x256xf32>
    %c8_44 = arith.constant 8 : index
    %c0_45 = arith.constant 0 : index
    %111 = vector.load %arg10[%c8_44, %c0_45] : memref<36x256xf32, #tpu.memory_space<vmem>>, vector<4x256xf32>
    tpu.vector_store %arg10[%c8_44, %c0_45], %110 {strides = array<i32>} : memref<36x256xf32, #tpu.memory_space<vmem>>, vector<4x256xf32>,
    %c1_i32_46 = arith.constant 1 : i32
    %112 = tpu.dynamic_rotate %96 by %c1_i32_46 dim 1 : vector<4x256xf32>, i32 -> vector<4x256xf32>
    %113 = vector.extract_strided_slice %0 {offsets = [3, 0], sizes = [1, 256], strides = [1, 1]} : vector<9x256xf32> to vector<1x256xf32>
    %114 = vector.broadcast %113 : vector<1x256xf32> to vector<4x256xf32>
    %115 = arith.mulf %112, %114 : vector<4x256xf32>
    %c12_47 = arith.constant 12 : index
    %c0_48 = arith.constant 0 : index
    %116 = vector.load %arg10[%c12_47, %c0_48] : memref<36x256xf32, #tpu.memory_space<vmem>>, vector<4x256xf32>
    tpu.vector_store %arg10[%c12_47, %c0_48], %115 {strides = array<i32>} : memref<36x256xf32, #tpu.memory_space<vmem>>, vector<4x256xf32>,
    %c16_49 = arith.constant 16 : index
    %c0_50 = arith.constant 0 : index
    %117 = vector.load %arg10[%c16_49, %c0_50] : memref<36x256xf32, #tpu.memory_space<vmem>>, vector<4x256xf32>
    tpu.vector_store %arg10[%c16_49, %c0_50], %96 {strides = array<i32>} : memref<36x256xf32, #tpu.memory_space<vmem>>, vector<4x256xf32>,
    %c255_i32_51 = arith.constant 255 : i32
    %118 = tpu.dynamic_rotate %96 by %c255_i32_51 dim 1 : vector<4x256xf32>, i32 -> vector<4x256xf32>
    %119 = vector.extract_strided_slice %0 {offsets = [5, 0], sizes = [1, 256], strides = [1, 1]} : vector<9x256xf32> to vector<1x256xf32>
    %120 = vector.broadcast %119 : vector<1x256xf32> to vector<4x256xf32>
    %121 = arith.mulf %118, %120 : vector<4x256xf32>
    %c20_52 = arith.constant 20 : index
    %c0_53 = arith.constant 0 : index
    %122 = vector.load %arg10[%c20_52, %c0_53] : memref<36x256xf32, #tpu.memory_space<vmem>>, vector<4x256xf32>
    tpu.vector_store %arg10[%c20_52, %c0_53], %121 {strides = array<i32>} : memref<36x256xf32, #tpu.memory_space<vmem>>, vector<4x256xf32>,
    %c241_i32_54 = arith.constant 241 : i32
    %123 = tpu.dynamic_rotate %96 by %c241_i32_54 dim 1 : vector<4x256xf32>, i32 -> vector<4x256xf32>
    %124 = vector.extract_strided_slice %0 {offsets = [6, 0], sizes = [1, 256], strides = [1, 1]} : vector<9x256xf32> to vector<1x256xf32>
    %125 = vector.broadcast %124 : vector<1x256xf32> to vector<4x256xf32>
    %126 = arith.mulf %123, %125 : vector<4x256xf32>
    %c24_55 = arith.constant 24 : index
    %c0_56 = arith.constant 0 : index
    %127 = vector.load %arg10[%c24_55, %c0_56] : memref<36x256xf32, #tpu.memory_space<vmem>>, vector<4x256xf32>
    tpu.vector_store %arg10[%c24_55, %c0_56], %126 {strides = array<i32>} : memref<36x256xf32, #tpu.memory_space<vmem>>, vector<4x256xf32>,
    %c240_i32_57 = arith.constant 240 : i32
    %128 = tpu.dynamic_rotate %96 by %c240_i32_57 dim 1 : vector<4x256xf32>, i32 -> vector<4x256xf32>
    %129 = vector.extract_strided_slice %0 {offsets = [7, 0], sizes = [1, 256], strides = [1, 1]} : vector<9x256xf32> to vector<1x256xf32>
    %130 = vector.broadcast %129 : vector<1x256xf32> to vector<4x256xf32>
    %131 = arith.mulf %128, %130 : vector<4x256xf32>
    %c28_58 = arith.constant 28 : index
    %c0_59 = arith.constant 0 : index
    %132 = vector.load %arg10[%c28_58, %c0_59] : memref<36x256xf32, #tpu.memory_space<vmem>>, vector<4x256xf32>
    tpu.vector_store %arg10[%c28_58, %c0_59], %131 {strides = array<i32>} : memref<36x256xf32, #tpu.memory_space<vmem>>, vector<4x256xf32>,
    %c239_i32_60 = arith.constant 239 : i32
    %133 = tpu.dynamic_rotate %96 by %c239_i32_60 dim 1 : vector<4x256xf32>, i32 -> vector<4x256xf32>
    %134 = vector.extract_strided_slice %0 {offsets = [8, 0], sizes = [1, 256], strides = [1, 1]} : vector<9x256xf32> to vector<1x256xf32>
    %135 = vector.broadcast %134 : vector<1x256xf32> to vector<4x256xf32>
    %136 = arith.mulf %133, %135 : vector<4x256xf32>
    %c32_61 = arith.constant 32 : index
    %c0_62 = arith.constant 0 : index
    %137 = vector.load %arg10[%c32_61, %c0_62] : memref<36x256xf32, #tpu.memory_space<vmem>>, vector<4x256xf32>
    tpu.vector_store %arg10[%c32_61, %c0_62], %136 {strides = array<i32>} : memref<36x256xf32, #tpu.memory_space<vmem>>, vector<4x256xf32>,
    %c0_63 = arith.constant 0 : index
    %c0_64 = arith.constant 0 : index
    %138 = vector.load %arg2[%c0_63, %c0_64] : memref<8x36xbf16, #tpu.memory_space<vmem>>, vector<8x36xbf16>
    %c0_65 = arith.constant 0 : index
    %c0_66 = arith.constant 0 : index
    %139 = vector.load %arg10[%c0_65, %c0_66] : memref<36x256xf32, #tpu.memory_space<vmem>>, vector<36x256xf32>
    %140 = arith.truncf %139 : vector<36x256xf32> to vector<36x256xbf16>
    %cst_67 = arith.constant dense<0.000000e+00> : vector<8x256xf32>
    %141 = tpu.matmul %138, %140, %cst_67 {dimension_numbers = #tpu.dot_dimension_numbers<[1], [0], [0], [1], [0, 0, 1, 1], [], []>} : vector<8x36xbf16>, vector<36x256xbf16>, vector<8x256xf32> -> vector<8x256xf32>
    %c0_68 = arith.constant 0 : index
    %c0_69 = arith.constant 0 : index
    %142 = vector.load %arg3[%c0_68, %c0_69] : memref<8x1xf32, #tpu.memory_space<vmem>>, vector<8x1xf32>
    %143 = vector.broadcast %142 : vector<8x1xf32> to vector<8x256xf32>
    %144 = arith.addf %141, %143 : vector<8x256xf32>
    %c0_70 = arith.constant 0 : index
    %c0_71 = arith.constant 0 : index
    %c0_72 = arith.constant 0 : index
    %145 = vector.load %arg8[%c0_70, %c0_71, %c0_72] : memref<1x8x256xf32, #tpu.memory_space<vmem>>, vector<1x8x256xf32>
    %146 = vector.shape_cast %145 : vector<1x8x256xf32> to vector<8x256xf32>
    %147 = vector.shape_cast %144 : vector<8x256xf32> to vector<1x8x256xf32>
    tpu.vector_store %arg8[%c0_70, %c0_71, %c0_72], %147 {strides = array<i32>} : memref<1x8x256xf32, #tpu.memory_space<vmem>>, vector<1x8x256xf32>,
    return
  }
  func.func @transform_0(%arg0: i32) -> (i32, i32) {
    %c0_i32 = arith.constant 0 : i32
    %c0_i32_0 = arith.constant 0 : i32
    %c0_i32_1 = arith.constant 0 : i32
    return %c0_i32, %c0_i32_0 : i32, i32
  }
  func.func @transform_1(%arg0: i32) -> (i32, i32) {
    %c0_i32 = arith.constant 0 : i32
    %c0_i32_0 = arith.constant 0 : i32
    %c0_i32_1 = arith.constant 0 : i32
    return %c0_i32, %c0_i32_0 : i32, i32
  }
  func.func @transform_2(%arg0: i32) -> (i32, i32) {
    %c0_i32 = arith.constant 0 : i32
    %c0_i32_0 = arith.constant 0 : i32
    %c0_i32_1 = arith.constant 0 : i32
    return %c0_i32, %c0_i32_0 : i32, i32
  }
  func.func @transform_3(%arg0: i32) -> (i32, i32) {
    %c0_i32 = arith.constant 0 : i32
    %c0_i32_0 = arith.constant 0 : i32
    %c0_i32_1 = arith.constant 0 : i32
    return %c0_i32, %c0_i32_0 : i32, i32
  }
  func.func @transform_4(%arg0: i32) -> (i32, i32) {
    %c0_i32 = arith.constant 0 : i32
    %c0_i32_0 = arith.constant 0 : i32
    %c0_i32_1 = arith.constant 0 : i32
    return %c0_i32, %c0_i32_0 : i32, i32
  }
  func.func @transform_5(%arg0: i32) -> (i32, i32, i32) {
    %c0_i32 = arith.constant 0 : i32
    %c0_i32_0 = arith.constant 0 : i32
    %c0_i32_1 = arith.constant 0 : i32
    return %arg0, %c0_i32, %c0_i32_0 : i32, i32, i32
  }
  func.func @transform_6(%arg0: i32) -> (i32, i32, i32, i32) {
    %c0_i32 = arith.constant 0 : i32
    %c0_i32_0 = arith.constant 0 : i32
    %c0_i32_1 = arith.constant 0 : i32
    %c0_i32_2 = arith.constant 0 : i32
    return %arg0, %c0_i32, %c0_i32_0, %c0_i32_1 : i32, i32, i32, i32
  }
  func.func @transform_7(%arg0: i32) -> (i32, i32, i32) {
    %c0_i32 = arith.constant 0 : i32
    %c0_i32_0 = arith.constant 0 : i32
    %c0_i32_1 = arith.constant 0 : i32
    return %arg0, %c0_i32, %c0_i32_0 : i32, i32, i32
  }
}

</mosaic_0001>

<llo_original>
// kernel: conv2d_deformable_forward.1
$region0: #{conv2d_deformable_forward.1}
  #allocation0 [shape = 'u32[]', space=smem, size = 0x4, offset = 0x4, fixed_abs, tag = 'smem constant byte address 0x4 - core index']
  #allocation1 [shape = 'u32[144,128]{1,0:T(1,128)}', space=vmem, size = 0x12000, scoped, tag = 'internal scratch']
  #allocation2 [shape = 'f32[36,256]{1,0:T(8,128)}', space=vmem, size = 0xa000, scoped, tag = 'scratch operand']
  #allocation3 [shape = 'f32[36,256]{1,0:T(8,128)}', space=vmem, size = 0xa000, scoped, tag = 'scratch operand']
  %s0 = inlined_call_operand.vmem [shape: bf16[8,36], index: 0, kind: input, shape index: {}]
  %s1 = inlined_call_operand.vmem [shape: bf16[8,36], index: 1, kind: input, shape index: {}]
  %s2 = inlined_call_operand.vmem [shape: f32[8,1], index: 2, kind: input, shape index: {}]
  %s3 = inlined_call_operand.vmem [shape: f32[9,256], index: 3, kind: input, shape index: {}]
  %s4 = inlined_call_operand.vmem [shape: f32[2,256], index: 4, kind: input, shape index: {}]
  %s5 = inlined_call_operand.vmem [shape: bf16[2,4,256], index: 5, kind: input, shape index: {}]
  %s6 = inlined_call_operand.vmem [shape: bf16[2,4,16,16], index: 6, kind: input, shape index: {}]
  %s7 = inlined_call_operand.vmem [shape: f32[2,8,256], index: 7, kind: output, shape index: {}]
  %s8 = sld [smem:[#allocation0]]
  $region61: #{conv2d_deformable_forward.1} parent=0
    _
  %s10 = ssub.s32 1, %s8
  %s11 = scalar_select 0, %s10, %s8
  loop: start=0, step=1, limit=4
  $region2: #{conv2d_deformable_forward.1} parent=0 // loop_pre_header
    _
  $region3: #{conv2d_deformable_forward.1} parent=0 // loop_header
    %s13 = sphi 0, %s17
    %p14 = scmp.ge.s32.totalorder %s13, 4
    %s21 = sphi 0, %s21
    %s23 = sphi 0, %s21
    %s24 = sphi 0, %s23
    %s38 = sphi 0, %s24
    %s42 = sphi 0, %s42
    %s44 = sphi 0, %s42
    %s45 = sphi 0, %s44
    %s59 = sphi 0, %s45
    %s63 = sphi 0, %s63
    %s65 = sphi 0, %s63
    %s66 = sphi 0, %s65
    %s80 = sphi 0, %s66
    %s84 = sphi 0, %s84
    %s86 = sphi 0, %s84
    %s87 = sphi 0, %s86
    %s101 = sphi 0, %s87
    %s105 = sphi 0, %s105
    %s107 = sphi 0, %s105
    %s108 = sphi 0, %s107
    %s122 = sphi 0, %s108
    %s128 = sphi 0, %s130
    %s131 = sphi 0, %s128
    %s132 = sphi 0, %s131
    %s148 = sphi 0, %s132
    %s154 = sphi 0, %s156
    %s157 = sphi 0, %s154
    %s158 = sphi 0, %s157
    %s174 = sphi 0, %s158
    %s180 = sphi 0, %s182
    %s183 = sphi 0, %s180
    %s184 = sphi 0, %s183
    %s200 = sphi 0, %s184
  $region4: #{conv2d_deformable_forward.1} parent=0 // loop_header_branch
    %16 = sbr.rel (%p14) target = $region8
  $region5: #{conv2d_deformable_forward.1} parent=0 // loop_body
    %s18 = ssub.s32 %s13, 1
    %s19 = ssub.s32 %s13, 2
    %s20 = sadd.s32 %s13, 1
    %s22 = sadd.s32 %s21, 1
    %p25 = scmp.eq.s32.totalorder %s13, 1
    %p26 = scmp.ne.s32.totalorder %s21, %s23
    %p27 = scmp.eq.s32.totalorder %s13, 0
    %p28 = por %p26, %p27
    %p29 = scmp.ne.s32.totalorder %s21, %s23
    %p30 = scmp.eq.s32.totalorder %s18, 1
    %p31 = por %p29, %p30
    %p32 = scmp.ne.s32.totalorder %s23, %s24
    %p33 = scmp.eq.s32.totalorder %s18, 0
    %p34 = por %p32, %p33
    %p35 = scmp.ne.s32.totalorder %s23, %s24
    %p36 = scmp.eq.s32.totalorder %s19, 1
    %p37 = por %p35, %p36
    %p39 = scmp.ne.s32.totalorder %s24, %s38
    %p40 = scmp.eq.s32.totalorder %s19, 0
    %p41 = por %p39, %p40
    %s43 = sadd.s32 %s42, 1
    %p46 = scmp.eq.s32.totalorder %s13, 1
    %p47 = scmp.ne.s32.totalorder %s42, %s44
    %p48 = scmp.eq.s32.totalorder %s13, 0
    %p49 = por %p47, %p48
    %p50 = scmp.ne.s32.totalorder %s42, %s44
    %p51 = scmp.eq.s32.totalorder %s18, 1
    %p52 = por %p50, %p51
    %p53 = scmp.ne.s32.totalorder %s44, %s45
    %p54 = scmp.eq.s32.totalorder %s18, 0
    %p55 = por %p53, %p54
    %p56 = scmp.ne.s32.totalorder %s44, %s45
    %p57 = scmp.eq.s32.totalorder %s19, 1
    %p58 = por %p56, %p57
    %p60 = scmp.ne.s32.totalorder %s45, %s59
    %p61 = scmp.eq.s32.totalorder %s19, 0
    %p62 = por %p60, %p61
    %s64 = sadd.s32 %s63, 1
    %p67 = scmp.eq.s32.totalorder %s13, 1
    %p68 = scmp.ne.s32.totalorder %s63, %s65
    %p69 = scmp.eq.s32.totalorder %s13, 0
    %p70 = por %p68, %p69
    %p71 = scmp.ne.s32.totalorder %s63, %s65
    %p72 = scmp.eq.s32.totalorder %s18, 1
    %p73 = por %p71, %p72
    %p74 = scmp.ne.s32.totalorder %s65, %s66
    %p75 = scmp.eq.s32.totalorder %s18, 0
    %p76 = por %p74, %p75
    %p77 = scmp.ne.s32.totalorder %s65, %s66
    %p78 = scmp.eq.s32.totalorder %s19, 1
    %p79 = por %p77, %p78
    %p81 = scmp.ne.s32.totalorder %s66, %s80
    %p82 = scmp.eq.s32.totalorder %s19, 0
    %p83 = por %p81, %p82
    %s85 = sadd.s32 %s84, 1
    %p88 = scmp.eq.s32.totalorder %s13, 1
    %p89 = scmp.ne.s32.totalorder %s84, %s86
    %p90 = scmp.eq.s32.totalorder %s13, 0
    %p91 = por %p89, %p90
    %p92 = scmp.ne.s32.totalorder %s84, %s86
    %p93 = scmp.eq.s32.totalorder %s18, 1
    %p94 = por %p92, %p93
    %p95 = scmp.ne.s32.totalorder %s86, %s87
    %p96 = scmp.eq.s32.totalorder %s18, 0
    %p97 = por %p95, %p96
    %p98 = scmp.ne.s32.totalorder %s86, %s87
    %p99 = scmp.eq.s32.totalorder %s19, 1
    %p100 = por %p98, %p99
    %p102 = scmp.ne.s32.totalorder %s87, %s101
    %p103 = scmp.eq.s32.totalorder %s19, 0
    %p104 = por %p102, %p103
    %s106 = sadd.s32 %s105, 1
    %p109 = scmp.eq.s32.totalorder %s13, 1
    %p110 = scmp.ne.s32.totalorder %s105, %s107
    %p111 = scmp.eq.s32.totalorder %s13, 0
    %p112 = por %p110, %p111
    %p113 = scmp.ne.s32.totalorder %s105, %s107
    %p114 = scmp.eq.s32.totalorder %s18, 1
    %p115 = por %p113, %p114
    %p116 = scmp.ne.s32.totalorder %s107, %s108
    %p117 = scmp.eq.s32.totalorder %s18, 0
    %p118 = por %p116, %p117
    %p119 = scmp.ne.s32.totalorder %s107, %s108
    %p120 = scmp.eq.s32.totalorder %s19, 1
    %p121 = por %p119, %p120
    %p123 = scmp.ne.s32.totalorder %s108, %s122
    %p124 = scmp.eq.s32.totalorder %s19, 0
    %p125 = por %p123, %p124
    %s126 = ssub.s32 %s13, %s20
    %p127 = scmp.eq.s32.totalorder %s126, 0
    %s129 = sadd.s32 %s128, 1
    %s130 = scalar_select %p127, %s128, %s129
    %p133 = pneg %p127
    %p134 = scmp.eq.s32.totalorder %s13, 1
    %p135 = por %p133, %p134
    %p136 = scmp.ne.s32.totalorder %s128, %s131
    %p137 = scmp.eq.s32.totalorder %s13, 0
    %p138 = por %p136, %p137
    %p139 = scmp.ne.s32.totalorder %s128, %s131
    %p140 = scmp.eq.s32.totalorder %s18, 1
    %p141 = por %p139, %p140
    %p142 = scmp.ne.s32.totalorder %s131, %s132
    %p143 = scmp.eq.s32.totalorder %s18, 0
    %p144 = por %p142, %p143
    %p145 = scmp.ne.s32.totalorder %s131, %s132
    %p146 = scmp.eq.s32.totalorder %s19, 1
    %p147 = por %p145, %p146
    %p149 = scmp.ne.s32.totalorder %s132, %s148
    %p150 = scmp.eq.s32.totalorder %s19, 0
    %p151 = por %p149, %p150
    %s152 = ssub.s32 %s13, %s20
    %p153 = scmp.eq.s32.totalorder %s152, 0
    %s155 = sadd.s32 %s154, 1
    %s156 = scalar_select %p153, %s154, %s155
    %p159 = pneg %p153
    %p160 = scmp.eq.s32.totalorder %s13, 1
    %p161 = por %p159, %p160
    %p162 = scmp.ne.s32.totalorder %s154, %s157
    %p163 = scmp.eq.s32.totalorder %s13, 0
    %p164 = por %p162, %p163
    %p165 = scmp.ne.s32.totalorder %s154, %s157
    %p166 = scmp.eq.s32.totalorder %s18, 1
    %p167 = por %p165, %p166
    %p168 = scmp.ne.s32.totalorder %s157, %s158
    %p169 = scmp.eq.s32.totalorder %s18, 0
    %p170 = por %p168, %p169
    %p171 = scmp.ne.s32.totalorder %s157, %s158
    %p172 = scmp.eq.s32.totalorder %s19, 1
    %p173 = por %p171, %p172
    %p175 = scmp.ne.s32.totalorder %s158, %s174
    %p176 = scmp.eq.s32.totalorder %s19, 0
    %p177 = por %p175, %p176
    %s178 = ssub.s32 %s13, %s20
    %p179 = scmp.eq.s32.totalorder %s178, 0
    %s181 = sadd.s32 %s180, 1
    %s182 = scalar_select %p179, %s180, %s181
    %p185 = pneg %p179
    %p186 = scmp.eq.s32.totalorder %s13, 1
    %p187 = por %p185, %p186
    %p188 = scmp.ne.s32.totalorder %s180, %s183
    %p189 = scmp.eq.s32.totalorder %s13, 0
    %p190 = por %p188, %p189
    %p191 = scmp.ne.s32.totalorder %s180, %s183
    %p192 = scmp.eq.s32.totalorder %s18, 1
    %p193 = por %p191, %p192
    %p194 = scmp.ne.s32.totalorder %s183, %s184
    %p195 = scmp.eq.s32.totalorder %s18, 0
    %p196 = por %p194, %p195
    %p197 = scmp.ne.s32.totalorder %s183, %s184
    %p198 = scmp.eq.s32.totalorder %s19, 1
    %p199 = por %p197, %p198
    %p201 = scmp.ne.s32.totalorder %s184, %s200
    %p202 = scmp.eq.s32.totalorder %s19, 0
    %p203 = por %p201, %p202
    %p204 = scmp.le.s32.totalorder 1, %s13
    %p205 = scmp.lt.s32.totalorder %s13, 3
    %p206 = pnand %p204, %p205
    %p207 = pneg %p206
    // Predicated region
    $region9: #{conv2d_deformable_forward.1} parent=5 // pred_check
      _
    $region10: #{conv2d_deformable_forward.1} parent=5 // pred_check_branch
      %209 = sbr.rel (%p206) target = $region12
    $region11: #{conv2d_deformable_forward.1} parent=5 // pred_region
      %s210 = ssub.s32 %s13, 1
      // Predicated region
      $region13: #{conv2d_deformable_forward.1} parent=11 // pred_check
        %p211 = pneg %p34
      $region14: #{conv2d_deformable_forward.1} parent=11 // pred_check_branch
        %213 = sbr.rel (%p211) target = $region16
      $region15: #{conv2d_deformable_forward.1} parent=11 // pred_region
        _
      $region16: #{conv2d_deformable_forward.1} parent=11 // pred_fallthru
        _
      // Predicated region
      $region17: #{conv2d_deformable_forward.1} parent=11 // pred_check
        %p214 = pneg %p55
      $region18: #{conv2d_deformable_forward.1} parent=11 // pred_check_branch
        %216 = sbr.rel (%p214) target = $region20
      $region19: #{conv2d_deformable_forward.1} parent=11 // pred_region
        _
      $region20: #{conv2d_deformable_forward.1} parent=11 // pred_fallthru
        _
      // Predicated region
      $region21: #{conv2d_deformable_forward.1} parent=11 // pred_check
        %p217 = pneg %p76
      $region22: #{conv2d_deformable_forward.1} parent=11 // pred_check_branch
        %219 = sbr.rel (%p217) target = $region24
      $region23: #{conv2d_deformable_forward.1} parent=11 // pred_region
        _
      $region24: #{conv2d_deformable_forward.1} parent=11 // pred_fallthru
        _
      // Predicated region
      $region25: #{conv2d_deformable_forward.1} parent=11 // pred_check
        %p220 = pneg %p97
      $region26: #{conv2d_deformable_forward.1} parent=11 // pred_check_branch
        %222 = sbr.rel (%p220) target = $region28
      $region27: #{conv2d_deformable_forward.1} parent=11 // pred_region
        _
      $region28: #{conv2d_deformable_forward.1} parent=11 // pred_fallthru
        _
      // Predicated region
      $region29: #{conv2d_deformable_forward.1} parent=11 // pred_check
        %p223 = pneg %p118
      $region30: #{conv2d_deformable_forward.1} parent=11 // pred_check_branch
        %225 = sbr.rel (%p223) target = $region32
      $region31: #{conv2d_deformable_forward.1} parent=11 // pred_region
        _
      $region32: #{conv2d_deformable_forward.1} parent=11 // pred_fallthru
        _
    $region12: #{conv2d_deformable_forward.1} parent=5 // pred_fallthru
      _
    %p226 = scmp.lt.s32.totalorder %s13, 2
    // Predicated region
    $region33: #{conv2d_deformable_forward.1} parent=5 // pred_check
      %p227 = pneg %p226
    $region34: #{conv2d_deformable_forward.1} parent=5 // pred_check_branch
      %229 = sbr.rel (%p227) target = $region36
    $region35: #{conv2d_deformable_forward.1} parent=5 // pred_region
      // Predicated region
      $region37: #{conv2d_deformable_forward.1} parent=35 // pred_check
        %p230 = pneg %p138
      $region38: #{conv2d_deformable_forward.1} parent=35 // pred_check_branch
        %232 = sbr.rel (%p230) target = $region40
      $region39: #{conv2d_deformable_forward.1} parent=35 // pred_region
        %p233 = scmp.lt.s32.totalorder %s13, 1
        %s234 = scalar_select %p233, %s13, 1
        %s235 = smul.addr %s234, 2
        %s236 = smul.addr %s235, 2
        %s237 = scalar_lea.vmem %s5, %s236
      $region40: #{conv2d_deformable_forward.1} parent=35 // pred_fallthru
        _
      // Predicated region
      $region41: #{conv2d_deformable_forward.1} parent=35 // pred_check
        %p238 = pneg %p164
      $region42: #{conv2d_deformable_forward.1} parent=35 // pred_check_branch
        %240 = sbr.rel (%p238) target = $region44
      $region43: #{conv2d_deformable_forward.1} parent=35 // pred_region
        %p241 = scmp.lt.s32.totalorder %s13, 1
        %s242 = scalar_select %p241, %s13, 1
        %s243 = smul.addr %s242, 8
        %s244 = smul.addr %s243, 4
        %s245 = scalar_lea.vmem %s6, %s244
      $region44: #{conv2d_deformable_forward.1} parent=35 // pred_fallthru
        _
    $region36: #{conv2d_deformable_forward.1} parent=5 // pred_fallthru
      _
    %p246 = scmp.le.s32.totalorder 1, %s13
    %p247 = scmp.lt.s32.totalorder %s13, 3
    %p248 = pnand %p246, %p247
    %p249 = pneg %p248
    // Predicated region
    $region45: #{conv2d_deformable_forward.1} parent=5 // pred_check
      _
    $region46: #{conv2d_deformable_forward.1} parent=5 // pred_check_branch
      %251 = sbr.rel (%p248) target = $region48
    $region47: #{conv2d_deformable_forward.1} parent=5 // pred_region
      %s252 = ssub.s32 %s13, 1
      %p253 = pneg %p34
      %p254 = pneg %p31
      %p255 = pneg %p55
      %p256 = pneg %p52
      %p257 = pneg %p76
      %p258 = pneg %p73
      %p259 = pneg %p97
      %p260 = pneg %p94
      %p261 = pneg %p118
      %p262 = pneg %p115
      %p263 = scmp.lt.s32.totalorder %s18, 1
      %s264 = scalar_select %p263, %s18, 1
      %s265 = smul.addr %s264, 2
      %s266 = smul.addr %s265, 2
      %s267 = scalar_lea.vmem %s5, %s266
      %p268 = pneg %p144
      %p269 = pneg %p141
      %p270 = scmp.lt.s32.totalorder %s18, 1
      %s271 = scalar_select %p270, %s18, 1
      %s272 = smul.addr %s271, 8
      %s273 = smul.addr %s272, 4
      %s274 = scalar_lea.vmem %s6, %s273
      %p275 = pneg %p170
      %p276 = pneg %p167
      %p277 = pneg %p196
      %p278 = pneg %p193
      %p279 = scmp.lt.s32.totalorder %s18, 1
      %s280 = scalar_select %p279, %s18, 1
      %s281 = smul.addr %s280, 2
      %s282 = smul.addr %s281, 8
      %s283 = scalar_lea.vmem %s7, %s282
      %p284 = scmp.lt.s32.totalorder %s18, 1
      %s285 = scalar_select %p284, %s18, 1
      %s286 = smul.addr %s285, 2
      %s287 = smul.addr %s286, 2
      %s288 = scalar_lea.vmem %s5, %s287
      %p289 = scmp.lt.s32.totalorder %s18, 1
      %s290 = scalar_select %p289, %s18, 1
      %s291 = smul.addr %s290, 8
      %s292 = smul.addr %s291, 4
      %s293 = scalar_lea.vmem %s6, %s292
      %p294 = scmp.lt.s32.totalorder %s18, 1
      %s295 = scalar_select %p294, %s18, 1
      %s296 = smul.addr %s295, 2
      %s297 = smul.addr %s296, 8
      %s298 = scalar_lea.vmem %s7, %s297
      %v300 = vld [vmem:[%s3] sm:$0xff]
      %v301 = vld [vmem:[%s3 + $0x8] sm:$0xff]
      %v302 = vld [vmem:[%s3 + $0x10] sm:$0x1]
      %v303 = vld [vmem:[%s3 + $0x18] sm:$0x1]
      %v304 = vld [vmem:[%s288] sm:$0xf]
      %v305 = vunpack.c.l.bf16 %v304
      %v307 = vcombine.high %v305, %v305
      %309 = vrot.lane.b32.xlu0 %v305, 17
      %v310 = vpop.permute.xlu0 %309
      %311 = vrot.lane.b32.xlu0 %v307, 17
      %v312 = vpop.permute.xlu0 %311
      %v313 = vlaneseq
      %v314 = vand.u32 %v313, 127
      %vm315 = vcmp.lt.s32.totalorder %v314, 17
      %v316 = vsel %vm315, %v310, %v312
      %v317 = vsel %vm315, %v312, %v310
      %v318 = vlaneseq
      %v319 = vshrl.u32 %v318, 7
      %v320 = vsub.s32 0, %v319
      %v321 = vrot.slane %v300, %v320
      %v322 = vlaneseq
      %v323 = vshrl.u32 %v322, 7
      %v324 = vsub.s32 0, %v323
      %v325 = vrot.slane %v301, %v324
      %v326 = vmul.f32 %v317, %v321
      %v327 = vmul.f32 %v316, %v325
      %328 = vst [vmem:[#allocation2] sm:$0xf] %v326
      %329 = vst [vmem:[#allocation2 + $0x8] sm:$0xf] %v327
      %330 = vrot.lane.b32.xlu0 %v305, 16
      %v331 = vpop.permute.xlu0 %330
      %332 = vrot.lane.b32.xlu0 %v307, 16
      %v333 = vpop.permute.xlu0 %332
      %vm334 = vcmp.lt.s32.totalorder %v314, 16
      %v335 = vsel %vm334, %v331, %v333
      %v336 = vsel %vm334, %v333, %v331
      %v337 = vlaneseq
      %v338 = vshrl.u32 %v337, 7
      %v339 = vsub.s32 1, %v338
      %v340 = vrot.slane %v300, %v339
      %v341 = vlaneseq
      %v342 = vshrl.u32 %v341, 7
      %v343 = vsub.s32 1, %v342
      %v344 = vrot.slane %v301, %v343
      %v345 = vmul.f32 %v336, %v340
      %v346 = vmul.f32 %v335, %v344
      %v349 = vrot.slane %v345, 4
      %v350 = vrot.slane %v346, 4
      %353 = vst [vmem:[#allocation2] sm:$0xf0] %v349
      %354 = vst [vmem:[#allocation2 + $0x8] sm:$0xf0] %v350
      %355 = vrot.lane.b32.xlu0 %v305, 15
      %v356 = vpop.permute.xlu0 %355
      %357 = vrot.lane.b32.xlu0 %v307, 15
      %v358 = vpop.permute.xlu0 %357
      %vm359 = vcmp.lt.s32.totalorder %v314, 15
      %v360 = vsel %vm359, %v356, %v358
      %v361 = vsel %vm359, %v358, %v356
      %v362 = vlaneseq
      %v363 = vshrl.u32 %v362, 7
      %v364 = vsub.s32 2, %v363
      %v365 = vrot.slane %v300, %v364
      %v366 = vlaneseq
      %v367 = vshrl.u32 %v366, 7
      %v368 = vsub.s32 2, %v367
      %v369 = vrot.slane %v301, %v368
      %v370 = vmul.f32 %v361, %v365
      %v371 = vmul.f32 %v360, %v369
      %372 = vst [vmem:[#allocation2 + $0x10] sm:$0xf] %v370
      %373 = vst [vmem:[#allocation2 + $0x18] sm:$0xf] %v371
      %374 = vrot.lane.b32.xlu0 %v305, 1
      %v375 = vpop.permute.xlu0 %374
      %376 = vrot.lane.b32.xlu0 %v307, 1
      %v377 = vpop.permute.xlu0 %376
      %vm378 = vcmp.lt.s32.totalorder %v314, 1
      %v379 = vsel %vm378, %v375, %v377
      %v380 = vsel %vm378, %v377, %v375
      %v381 = vlaneseq
      %v382 = vshrl.u32 %v381, 7
      %v383 = vsub.s32 3, %v382
      %v384 = vrot.slane %v300, %v383
      %v385 = vlaneseq
      %v386 = vshrl.u32 %v385, 7
      %v387 = vsub.s32 3, %v386
      %v388 = vrot.slane %v301, %v387
      %v389 = vmul.f32 %v380, %v384
      %v390 = vmul.f32 %v379, %v388
      %v393 = vrot.slane %v389, 4
      %v394 = vrot.slane %v390, 4
      %397 = vst [vmem:[#allocation2 + $0x10] sm:$0xf0] %v393
      %398 = vst [vmem:[#allocation2 + $0x18] sm:$0xf0] %v394
      %399 = vst [vmem:[#allocation2 + $0x20] sm:$0xf] %v305
      %400 = vst [vmem:[#allocation2 + $0x28] sm:$0xf] %v307
      %401 = vrot.lane.b32.xlu0 %v305, 127
      %v402 = vpop.permute.xlu0 %401
      %403 = vrot.lane.b32.xlu0 %v307, 127
      %v404 = vpop.permute.xlu0 %403
      %vm405 = vcmp.lt.s32.totalorder %v314, 127
      %v406 = vsel %vm405, %v402, %v404
      %v407 = vsel %vm405, %v404, %v402
      %v408 = vlaneseq
      %v409 = vshrl.u32 %v408, 7
      %v410 = vsub.s32 5, %v409
      %v411 = vrot.slane %v300, %v410
      %v412 = vlaneseq
      %v413 = vshrl.u32 %v412, 7
      %v414 = vsub.s32 5, %v413
      %v415 = vrot.slane %v301, %v414
      %v416 = vmul.f32 %v406, %v411
      %v417 = vmul.f32 %v407, %v415
      %v420 = vrot.slane %v416, 4
      %v421 = vrot.slane %v417, 4
      %424 = vst [vmem:[#allocation2 + $0x20] sm:$0xf0] %v420
      %425 = vst [vmem:[#allocation2 + $0x28] sm:$0xf0] %v421
      %426 = vrot.lane.b32.xlu0 %v305, 113
      %v427 = vpop.permute.xlu0 %426
      %428 = vrot.lane.b32.xlu0 %v307, 113
      %v429 = vpop.permute.xlu0 %428
      %vm430 = vcmp.lt.s32.totalorder %v314, 113
      %v431 = vsel %vm430, %v427, %v429
      %v432 = vsel %vm430, %v429, %v427
      %v433 = vlaneseq
      %v434 = vshrl.u32 %v433, 7
      %v435 = vsub.s32 6, %v434
      %v436 = vrot.slane %v300, %v435
      %v437 = vlaneseq
      %v438 = vshrl.u32 %v437, 7
      %v439 = vsub.s32 6, %v438
      %v440 = vrot.slane %v301, %v439
      %v441 = vmul.f32 %v431, %v436
      %v442 = vmul.f32 %v432, %v440
      %443 = vst [vmem:[#allocation2 + $0x30] sm:$0xf] %v441
      %444 = vst [vmem:[#allocation2 + $0x38] sm:$0xf] %v442
      %445 = vrot.lane.b32.xlu0 %v305, 112
      %v446 = vpop.permute.xlu0 %445
      %447 = vrot.lane.b32.xlu0 %v307, 112
      %v448 = vpop.permute.xlu0 %447
      %vm449 = vcmp.lt.s32.totalorder %v314, 112
      %v450 = vsel %vm449, %v446, %v448
      %v451 = vsel %vm449, %v448, %v446
      %v452 = vlaneseq
      %v453 = vshrl.u32 %v452, 7
      %v454 = vsub.s32 7, %v453
      %v455 = vrot.slane %v300, %v454
      %v456 = vlaneseq
      %v457 = vshrl.u32 %v456, 7
      %v458 = vsub.s32 7, %v457
      %v459 = vrot.slane %v301, %v458
      %v460 = vmul.f32 %v450, %v455
      %v461 = vmul.f32 %v451, %v459
      %v464 = vrot.slane %v460, 4
      %v465 = vrot.slane %v461, 4
      %468 = vst [vmem:[#allocation2 + $0x30] sm:$0xf0] %v464
      %469 = vst [vmem:[#allocation2 + $0x38] sm:$0xf0] %v465
      %470 = vrot.lane.b32.xlu0 %v305, 111
      %v471 = vpop.permute.xlu0 %470
      %472 = vrot.lane.b32.xlu0 %v307, 111
      %v473 = vpop.permute.xlu0 %472
      %vm474 = vcmp.lt.s32.totalorder %v314, 111
      %v475 = vsel %vm474, %v471, %v473
      %v476 = vsel %vm474, %v473, %v471
      %v477 = vlaneseq
      %v478 = vshrl.u32 %v477, 7
      %v479 = vsub.s32 0, %v478
      %v480 = vrot.slane %v302, %v479
      %v481 = vlaneseq
      %v482 = vshrl.u32 %v481, 7
      %v483 = vsub.s32 0, %v482
      %v484 = vrot.slane %v303, %v483
      %v485 = vmul.f32 %v475, %v480
      %v486 = vmul.f32 %v476, %v484
      %487 = vst [vmem:[#allocation2 + $0x40] sm:$0xf] %v485
      %488 = vst [vmem:[#allocation2 + $0x48] sm:$0xf] %v486
      %v489 = vld [vmem:[%s0] sm:$0xf]
      %v490 = vld [vmem:[#allocation2] sm:$0xff]
      %v491 = vld [vmem:[#allocation2 + $0x8] sm:$0xff]
      %v492 = vld [vmem:[#allocation2 + $0x10] sm:$0xff]
      %v493 = vld [vmem:[#allocation2 + $0x18] sm:$0xff]
      %v494 = vld [vmem:[#allocation2 + $0x20] sm:$0xff]
      %v495 = vld [vmem:[#allocation2 + $0x28] sm:$0xff]
      %v496 = vld [vmem:[#allocation2 + $0x30] sm:$0xff]
      %v497 = vld [vmem:[#allocation2 + $0x38] sm:$0xff]
      %v498 = vld [vmem:[#allocation2 + $0x40] sm:$0xf]
      %v499 = vld [vmem:[#allocation2 + $0x48] sm:$0xf]
      %v500 = vpack.c.bf16 %v492, %v490
      %v501 = vpack.c.bf16 %v493, %v491
      %v502 = vpack.c.bf16 %v496, %v494
      %v503 = vpack.c.bf16 %v497, %v495
      %v504 = vpack.c.bf16 %v498, %v498
      %v505 = vpack.c.bf16 %v499, %v499
      %vm506 = vcmask 293888
      %v508 = vsel %vm506, %v489, 0
      %vm510 = vcmask 1041408
      %v512 = vsel %vm510, %v504, 0
      %v515 = vsel %vm510, %v505, 0
      %517 = vmatprep.subr.bf16.mxu0 %v501
      %518 = vmatpush1.bf16.msra.mxu0 %v500
      %519 = vmatprep.subr.bf16.mxu0 %v503
      %520 = vmatpush1.bf16.msra.mxu0 %v502
      %521 = vmatprep.subr.bf16.mxu0 %v515
      %522 = vmatpush1.bf16.msra.mxu0 %v512
      %523 = vmatprep.subr.bf16.mxu0 0
      %524 = vmatpush1.bf16.msra.mxu0 0
      %525 = vmatprep.subr.bf16.mxu0 0
      %526 = vmatpush1.bf16.msra.mxu0 0
      %527 = vmatprep.subr.bf16.mxu0 0
      %528 = vmatpush1.bf16.msra.mxu0 0
      %529 = vmatprep.subr.bf16.mxu0 0
      %530 = vmatpush1.bf16.msra.mxu0 0
      %531 = vmatprep.subr.bf16.mxu0 0
      %532 = vmatpush1.bf16.msra.mxu0 0
      %533 = vmatprep.subr.bf16.mxu0 0
      %534 = vmatpush1.bf16.msra.mxu0 0
      %535 = vmatprep.subr.bf16.mxu0 0
      %536 = vmatpush1.bf16.msra.mxu0 0
      %537 = vmatprep.subr.bf16.mxu0 0
      %538 = vmatpush1.bf16.msra.mxu0 0
      %539 = vmatprep.subr.bf16.mxu0 0
      %540 = vmatpush1.bf16.msra.mxu0 0
      %541 = vmatprep.subr.bf16.mxu0 0
      %542 = vmatpush1.bf16.msra.mxu0 0
      %543 = vmatprep.subr.bf16.mxu0 0
      %544 = vmatpush1.bf16.msra.mxu0 0
      %545 = vmatprep.subr.bf16.mxu0 0
      %546 = vmatpush1.bf16.msra.mxu0 0
      %547 = vmatprep.subr.bf16.mxu0 0
      %548 = vmatpush1.bf16.msra.mxu0 0
      %549 = vmatprep.mubr.bf16.mxu0 0
      %550 = vmatmul.mubr.bf16.gmra.mrb[0].mxu0 %v508
      %v551 = vpop.f32.mrb[0].mxu0
      %v552 = vadd.f32 0.0, %v551
      %v553 = vpop.f32.mrb[0].mxu0
      %v554 = vadd.f32 0.0, %v553
      %v555 = vpop.f32.mrb[0].mxu0
      %v556 = vpop.f32.mrb[0].mxu0
      %557 = vdwg.mxu0
      %v558 = vld [vmem:[%s4] ss:$2 sm:$0x3]
      %s559 = scalar_lea.vmem %s4, 1
      %v560 = vld [vmem:[%s559] ss:$2 sm:$0x3]
      %v562 = vlaneseq
      %v563 = vshrl.u32 %v562, 7
      %v564 = vsub.s32 0, %v563
      %v565 = vrot.slane %v558, %v564
      %v566 = vlaneseq
      %v567 = vshrl.u32 %v566, 7
      %v568 = vsub.s32 1, %v567
      %v569 = vrot.slane %v558, %v568
      %v572 = vadd.f32 %v552, %v565
      %v573 = vadd.f32 %v554, %v569
      %v575 = vlaneseq
      %v576 = vshrl.u32 %v575, 7
      %v577 = vsub.s32 0, %v576
      %v578 = vrot.slane %v560, %v577
      %v579 = vlaneseq
      %v580 = vshrl.u32 %v579, 7
      %v581 = vsub.s32 1, %v580
      %v582 = vrot.slane %v560, %v581
      %v585 = vadd.f32 %v552, %v578
      %v586 = vadd.f32 %v554, %v582
      %v587 = vadd.f32 %v572, 1.0
      %v588 = vadd.f32 %v573, 1.0
      %v589 = vmul.f32 %v587, 8.0
      %v590 = vmul.f32 %v588, 8.0
      %v591 = vsub.f32 %v589, 0.5
      %v592 = vsub.f32 %v590, 0.5
      %v593 = vadd.f32 %v585, 1.0
      %v594 = vadd.f32 %v586, 1.0
      %v595 = vmul.f32 %v593, 8.0
      %v596 = vmul.f32 %v594, 8.0
      %v597 = vsub.f32 %v595, 0.5
      %v598 = vsub.f32 %v596, 0.5
      %v599 = vlaneseq
      %v600 = vshrl.u32 %v599, 7
      %v601 = vadd.s32 %v600, 8
      %v602 = vcvt.s32.f32 %v600
      %v603 = vcvt.s32.f32 %v601
      %v606 = vcombine.low %v597, %v598
      %v608 = vunpack.c.l.s4 1966171168
      %v609 = vunpack.c.0.s8 %v608
      %v610 = vlaneseq
      %v611 = vshrl.u32 %v610, 7
      %v612 = vsub.s32 %v609, %v611
      %v613 = vrot.slane %v606, %v612
      %v614 = vcombine.high %v613, %v613
      %v616 = vunpack.c.l.s4 1966171168
      %v617 = vunpack.c.0.s8 %v616
      %v618 = vlaneseq
      %v619 = vshrl.u32 %v618, 7
      %v620 = vsub.s32 %v617, %v619
      %v621 = vrot.slane %v613, %v620
      %v623 = vunpack.c.l.s4 1966171168
      %v624 = vunpack.c.0.s8 %v623
      %v625 = vlaneseq
      %v626 = vshrl.u32 %v625, 7
      %v627 = vsub.s32 %v624, %v626
      %v628 = vrot.slane %v614, %v627
      %v629 = vcombine.high %v621, %v621
      %v630 = vcombine.high %v628, %v628
      %v631 = vlaneseq
      %v632 = vshrl.u32 %v631, 7
      %v633 = vsub.s32 0, %v632
      %v634 = vrot.slane %v621, %v633
      %v635 = vlaneseq
      %v636 = vshrl.u32 %v635, 7
      %v637 = vsub.s32 1, %v636
      %v638 = vrot.slane %v621, %v637
      %v639 = vlaneseq
      %v640 = vshrl.u32 %v639, 7
      %v641 = vsub.s32 0, %v640
      %v642 = vrot.slane %v628, %v641
      %v643 = vlaneseq
      %v644 = vshrl.u32 %v643, 7
      %v645 = vsub.s32 1, %v644
      %v646 = vrot.slane %v628, %v645
      %v647 = vlaneseq
      %v648 = vshrl.u32 %v647, 7
      %v649 = vsub.s32 0, %v648
      %v650 = vrot.slane %v629, %v649
      %v651 = vlaneseq
      %v652 = vshrl.u32 %v651, 7
      %v653 = vsub.s32 1, %v652
      %v654 = vrot.slane %v629, %v653
      %v655 = vlaneseq
      %v656 = vshrl.u32 %v655, 7
      %v657 = vsub.s32 0, %v656
      %v658 = vrot.slane %v630, %v657
      %v659 = vlaneseq
      %v660 = vshrl.u32 %v659, 7
      %v661 = vsub.s32 1, %v660
      %v662 = vrot.slane %v630, %v661
      %v671 = vsub.f32 %v602, %v634
      %v672 = vsub.f32 %v602, %v638
      %v673 = vsub.f32 %v603, %v634
      %v674 = vsub.f32 %v603, %v638
      %v675 = vsub.f32 %v602, %v642
      %v676 = vsub.f32 %v602, %v646
      %v677 = vsub.f32 %v603, %v642
      %v678 = vsub.f32 %v603, %v646
      %v679 = vsub.f32 %v602, %v650
      %v680 = vsub.f32 %v602, %v654
      %v681 = vsub.f32 %v603, %v650
      %v682 = vsub.f32 %v603, %v654
      %v683 = vsub.f32 %v602, %v658
      %v684 = vsub.f32 %v602, %v662
      %v685 = vsub.f32 %v603, %v658
      %v686 = vsub.f32 %v603, %v662
      %v687 = vand.u32 2147483647, %v671
      %v688 = vand.u32 2147483647, %v672
      %v689 = vand.u32 2147483647, %v673
      %v690 = vand.u32 2147483647, %v674
      %v691 = vand.u32 2147483647, %v675
      %v692 = vand.u32 2147483647, %v676
      %v693 = vand.u32 2147483647, %v677
      %v694 = vand.u32 2147483647, %v678
      %v695 = vand.u32 2147483647, %v679
      %v696 = vand.u32 2147483647, %v680
      %v697 = vand.u32 2147483647, %v681
      %v698 = vand.u32 2147483647, %v682
      %v699 = vand.u32 2147483647, %v683
      %v700 = vand.u32 2147483647, %v684
      %v701 = vand.u32 2147483647, %v685
      %v702 = vand.u32 2147483647, %v686
      %v703 = vsub.f32 1.0, %v687
      %v704 = vsub.f32 1.0, %v688
      %v705 = vsub.f32 1.0, %v689
      %v706 = vsub.f32 1.0, %v690
      %v707 = vsub.f32 1.0, %v691
      %v708 = vsub.f32 1.0, %v692
      %v709 = vsub.f32 1.0, %v693
      %v710 = vsub.f32 1.0, %v694
      %v711 = vsub.f32 1.0, %v695
      %v712 = vsub.f32 1.0, %v696
      %v713 = vsub.f32 1.0, %v697
      %v714 = vsub.f32 1.0, %v698
      %v715 = vsub.f32 1.0, %v699
      %v716 = vsub.f32 1.0, %v700
      %v717 = vsub.f32 1.0, %v701
      %v718 = vsub.f32 1.0, %v702
      %v719 = vmax.f32 %v703, 0.0
      %v720 = vmax.f32 %v704, 0.0
      %v721 = vmax.f32 %v705, 0.0
      %v722 = vmax.f32 %v706, 0.0
      %v723 = vmax.f32 %v707, 0.0
      %v724 = vmax.f32 %v708, 0.0
      %v725 = vmax.f32 %v709, 0.0
      %v726 = vmax.f32 %v710, 0.0
      %v727 = vmax.f32 %v711, 0.0
      %v728 = vmax.f32 %v712, 0.0
      %v729 = vmax.f32 %v713, 0.0
      %v730 = vmax.f32 %v714, 0.0
      %v731 = vmax.f32 %v715, 0.0
      %v732 = vmax.f32 %v716, 0.0
      %v733 = vmax.f32 %v717, 0.0
      %v734 = vmax.f32 %v718, 0.0
      %v737 = vcombine.high %v591, %v592
      %v739 = vunpack.c.l.s4 1966171168
      %v740 = vunpack.c.0.s8 %v739
      %v741 = vlaneseq
      %v742 = vshrl.u32 %v741, 7
      %v743 = vsub.s32 %v740, %v742
      %v744 = vrot.slane %v737, %v743
      %v745 = vcombine.high %v744, %v744
      %v747 = vunpack.c.l.s4 1966171168
      %v748 = vunpack.c.0.s8 %v747
      %v749 = vlaneseq
      %v750 = vshrl.u32 %v749, 7
      %v751 = vsub.s32 %v748, %v750
      %v752 = vrot.slane %v744, %v751
      %v754 = vunpack.c.l.s4 1966171168
      %v755 = vunpack.c.0.s8 %v754
      %v756 = vlaneseq
      %v757 = vshrl.u32 %v756, 7
      %v758 = vsub.s32 %v755, %v757
      %v759 = vrot.slane %v745, %v758
      %v760 = vcombine.high %v752, %v752
      %v761 = vcombine.high %v759, %v759
      %v762 = vlaneseq
      %v763 = vshrl.u32 %v762, 7
      %v764 = vsub.s32 0, %v763
      %v765 = vrot.slane %v752, %v764
      %v766 = vlaneseq
      %v767 = vshrl.u32 %v766, 7
      %v768 = vsub.s32 1, %v767
      %v769 = vrot.slane %v752, %v768
      %v770 = vlaneseq
      %v771 = vshrl.u32 %v770, 7
      %v772 = vsub.s32 0, %v771
      %v773 = vrot.slane %v759, %v772
      %v774 = vlaneseq
      %v775 = vshrl.u32 %v774, 7
      %v776 = vsub.s32 1, %v775
      %v777 = vrot.slane %v759, %v776
      %v778 = vlaneseq
      %v779 = vshrl.u32 %v778, 7
      %v780 = vsub.s32 0, %v779
      %v781 = vrot.slane %v760, %v780
      %v782 = vlaneseq
      %v783 = vshrl.u32 %v782, 7
      %v784 = vsub.s32 1, %v783
      %v785 = vrot.slane %v760, %v784
      %v786 = vlaneseq
      %v787 = vshrl.u32 %v786, 7
      %v788 = vsub.s32 0, %v787
      %v789 = vrot.slane %v761, %v788
      %v790 = vlaneseq
      %v791 = vshrl.u32 %v790, 7
      %v792 = vsub.s32 1, %v791
      %v793 = vrot.slane %v761, %v792
      %v802 = vsub.f32 %v602, %v765
      %v803 = vsub.f32 %v602, %v769
      %v804 = vsub.f32 %v603, %v765
      %v805 = vsub.f32 %v603, %v769
      %v806 = vsub.f32 %v602, %v773
      %v807 = vsub.f32 %v602, %v777
      %v808 = vsub.f32 %v603, %v773
      %v809 = vsub.f32 %v603, %v777
      %v810 = vsub.f32 %v602, %v781
      %v811 = vsub.f32 %v602, %v785
      %v812 = vsub.f32 %v603, %v781
      %v813 = vsub.f32 %v603, %v785
      %v814 = vsub.f32 %v602, %v789
      %v815 = vsub.f32 %v602, %v793
      %v816 = vsub.f32 %v603, %v789
      %v817 = vsub.f32 %v603, %v793
      %v818 = vand.u32 2147483647, %v802
      %v819 = vand.u32 2147483647, %v803
      %v820 = vand.u32 2147483647, %v804
      %v821 = vand.u32 2147483647, %v805
      %v822 = vand.u32 2147483647, %v806
      %v823 = vand.u32 2147483647, %v807
      %v824 = vand.u32 2147483647, %v808
      %v825 = vand.u32 2147483647, %v809
      %v826 = vand.u32 2147483647, %v810
      %v827 = vand.u32 2147483647, %v811
      %v828 = vand.u32 2147483647, %v812
      %v829 = vand.u32 2147483647, %v813
      %v830 = vand.u32 2147483647, %v814
      %v831 = vand.u32 2147483647, %v815
      %v832 = vand.u32 2147483647, %v816
      %v833 = vand.u32 2147483647, %v817
      %v834 = vsub.f32 1.0, %v818
      %v835 = vsub.f32 1.0, %v819
      %v836 = vsub.f32 1.0, %v820
      %v837 = vsub.f32 1.0, %v821
      %v838 = vsub.f32 1.0, %v822
      %v839 = vsub.f32 1.0, %v823
      %v840 = vsub.f32 1.0, %v824
      %v841 = vsub.f32 1.0, %v825
      %v842 = vsub.f32 1.0, %v826
      %v843 = vsub.f32 1.0, %v827
      %v844 = vsub.f32 1.0, %v828
      %v845 = vsub.f32 1.0, %v829
      %v846 = vsub.f32 1.0, %v830
      %v847 = vsub.f32 1.0, %v831
      %v848 = vsub.f32 1.0, %v832
      %v849 = vsub.f32 1.0, %v833
      %v850 = vmax.f32 %v834, 0.0
      %v851 = vmax.f32 %v835, 0.0
      %v852 = vmax.f32 %v836, 0.0
      %v853 = vmax.f32 %v837, 0.0
      %v854 = vmax.f32 %v838, 0.0
      %v855 = vmax.f32 %v839, 0.0
      %v856 = vmax.f32 %v840, 0.0
      %v857 = vmax.f32 %v841, 0.0
      %v858 = vmax.f32 %v842, 0.0
      %v859 = vmax.f32 %v843, 0.0
      %v860 = vmax.f32 %v844, 0.0
      %v861 = vmax.f32 %v845, 0.0
      %v862 = vmax.f32 %v846, 0.0
      %v863 = vmax.f32 %v847, 0.0
      %v864 = vmax.f32 %v848, 0.0
      %v865 = vmax.f32 %v849, 0.0
      %v866 = vld [vmem:[%s293] sm:$0xf]
      %v867 = vld [vmem:[%s293 + $0x4] sm:$0xf]
      %v868 = vld [vmem:[%s293 + $0x8] sm:$0xf]
      %v869 = vld [vmem:[%s293 + $0xc] sm:$0xf]
      %v870 = vld [vmem:[%s293 + $0x10] sm:$0xf]
      %v871 = vld [vmem:[%s293 + $0x14] sm:$0xf]
      %v872 = vld [vmem:[%s293 + $0x18] sm:$0xf]
      %v873 = vld [vmem:[%s293 + $0x1c] sm:$0xf]
      %v874 = vunpack.c.l.bf16 %v866
      %v875 = vunpack.c.l.bf16 %v867
      %v876 = vunpack.c.l.bf16 %v868
      %v877 = vunpack.c.l.bf16 %v869
      %v878 = vunpack.c.l.bf16 %v870
      %v879 = vunpack.c.l.bf16 %v871
      %v880 = vunpack.c.l.bf16 %v872
      %v881 = vunpack.c.l.bf16 %v873
      %vm882 = vcmask 130048
      %v884 = vsel %vm882, %v874, 0
      %v887 = vsel %vm882, %v875, 0
      %889 = vmatprep.subr.mxu0 %v851
      %890 = vmatpush1.msra.mxu0 %v850
      %891 = vmatprep.subr.mxu0 %v853
      %892 = vmatpush1.msra.mxu0 %v852
      %893 = vmatprep.subr.mxu0 0.0
      %894 = vmatpush1.msra.mxu0 0.0
      %895 = vmatprep.subr.mxu0 0.0
      %896 = vmatpush1.msra.mxu0 0.0
      %897 = vmatprep.subr.mxu0 0.0
      %898 = vmatpush1.msra.mxu0 0.0
      %899 = vmatprep.subr.mxu0 0.0
      %900 = vmatpush1.msra.mxu0 0.0
      %901 = vmatprep.subr.mxu0 0.0
      %902 = vmatpush1.msra.mxu0 0.0
      %903 = vmatprep.subr.mxu0 0.0
      %904 = vmatpush1.msra.mxu0 0.0
      %905 = vmatprep.subr.mxu0 0.0
      %906 = vmatpush1.msra.mxu0 0.0
      %907 = vmatprep.subr.mxu0 0.0
      %908 = vmatpush1.msra.mxu0 0.0
      %909 = vmatprep.subr.mxu0 0.0
      %910 = vmatpush1.msra.mxu0 0.0
      %911 = vmatprep.subr.mxu0 0.0
      %912 = vmatpush1.msra.mxu0 0.0
      %913 = vmatprep.subr.mxu0 0.0
      %914 = vmatpush1.msra.mxu0 0.0
      %915 = vmatprep.subr.mxu0 0.0
      %916 = vmatpush1.msra.mxu0 0.0
      %917 = vmatprep.subr.mxu0 0.0
      %918 = vmatpush1.msra.mxu0 0.0
      %919 = vmatprep.subr.mxu0 0.0
      %920 = vmatpush1.msra.mxu0 0.0
      %921 = vmatprep.subr.mxu0 0.0
      %922 = vmatpush1.msra.mxu0 0.0
      %923 = vmatprep.subr.mxu0 0.0
      %924 = vmatpush1.msra.mxu0 0.0
      %925 = vmatprep.subr.mxu0 0.0
      %926 = vmatpush1.msra.mxu0 0.0
      %927 = vmatprep.subr.mxu0 0.0
      %928 = vmatpush1.msra.mxu0 0.0
      %929 = vmatprep.subr.mxu0 0.0
      %930 = vmatpush1.msra.mxu0 0.0
      %931 = vmatprep.subr.mxu0 0.0
      %932 = vmatpush1.msra.mxu0 0.0
      %933 = vmatprep.subr.mxu0 0.0
      %934 = vmatpush1.msra.mxu0 0.0
      %935 = vmatprep.subr.mxu0 0.0
      %936 = vmatpush1.msra.mxu0 0.0
      %937 = vmatprep.subr.mxu0 0.0
      %938 = vmatpush1.msra.mxu0 0.0
      %939 = vmatprep.subr.mxu0 0.0
      %940 = vmatpush1.msra.mxu0 0.0
      %941 = vmatprep.subr.mxu0 0.0
      %942 = vmatpush1.msra.mxu0 0.0
      %943 = vmatprep.subr.mxu0 0.0
      %944 = vmatpush1.msra.mxu0 0.0
      %945 = vmatprep.subr.mxu0 0.0
      %946 = vmatpush1.msra.mxu0 0.0
      %947 = vmatprep.subr.mxu0 0.0
      %948 = vmatpush1.msra.mxu0 0.0
      %949 = vmatprep.subr.mxu0 0.0
      %950 = vmatpush1.msra.mxu0 0.0
      %951 = vmatprep.subr.mxu0 0.0
      %952 = vmatpush1.msra.mxu0 0.0
      %953 = vmatprep.mubr.f32.mxu0 0.0
      %954 = vmatmul.mubr.f32.gmra.mrb[0].mxu0 %v884
      %v955 = vpop.f32.mrb[0].mxu0
      %v956 = vadd.f32 0.0, %v955
      %v957 = vpop.f32.mrb[0].mxu0
      %v958 = vadd.f32 0.0, %v957
      %959 = vmatprep.mubr.f32.mxu0 0.0
      %960 = vmatmul.mubr.f32.gmra.mrb[0].mxu0 %v887
      %v961 = vpop.f32.mrb[0].mxu0
      %v962 = vadd.f32 0.0, %v961
      %v963 = vpop.f32.mrb[0].mxu0
      %v964 = vadd.f32 0.0, %v963
      %965 = vdwg.mxu0
      %v967 = vsel %vm882, %v876, 0
      %v970 = vsel %vm882, %v877, 0
      %972 = vmatprep.subr.mxu0 %v855
      %973 = vmatpush1.msra.mxu0 %v854
      %974 = vmatprep.subr.mxu0 %v857
      %975 = vmatpush1.msra.mxu0 %v856
      %976 = vmatprep.subr.mxu0 0.0
      %977 = vmatpush1.msra.mxu0 0.0
      %978 = vmatprep.subr.mxu0 0.0
      %979 = vmatpush1.msra.mxu0 0.0
      %980 = vmatprep.subr.mxu0 0.0
      %981 = vmatpush1.msra.mxu0 0.0
      %982 = vmatprep.subr.mxu0 0.0
      %983 = vmatpush1.msra.mxu0 0.0
      %984 = vmatprep.subr.mxu0 0.0
      %985 = vmatpush1.msra.mxu0 0.0
      %986 = vmatprep.subr.mxu0 0.0
      %987 = vmatpush1.msra.mxu0 0.0
      %988 = vmatprep.subr.mxu0 0.0
      %989 = vmatpush1.msra.mxu0 0.0
      %990 = vmatprep.subr.mxu0 0.0
      %991 = vmatpush1.msra.mxu0 0.0
      %992 = vmatprep.subr.mxu0 0.0
      %993 = vmatpush1.msra.mxu0 0.0
      %994 = vmatprep.subr.mxu0 0.0
      %995 = vmatpush1.msra.mxu0 0.0
      %996 = vmatprep.subr.mxu0 0.0
      %997 = vmatpush1.msra.mxu0 0.0
      %998 = vmatprep.subr.mxu0 0.0
      %999 = vmatpush1.msra.mxu0 0.0
      %1000 = vmatprep.subr.mxu0 0.0
      %1001 = vmatpush1.msra.mxu0 0.0
      %1002 = vmatprep.subr.mxu0 0.0
      %1003 = vmatpush1.msra.mxu0 0.0
      %1004 = vmatprep.subr.mxu0 0.0
      %1005 = vmatpush1.msra.mxu0 0.0
      %1006 = vmatprep.subr.mxu0 0.0
      %1007 = vmatpush1.msra.mxu0 0.0
      %1008 = vmatprep.subr.mxu0 0.0
      %1009 = vmatpush1.msra.mxu0 0.0
      %1010 = vmatprep.subr.mxu0 0.0
      %1011 = vmatpush1.msra.mxu0 0.0
      %1012 = vmatprep.subr.mxu0 0.0
      %1013 = vmatpush1.msra.mxu0 0.0
      %1014 = vmatprep.subr.mxu0 0.0
      %1015 = vmatpush1.msra.mxu0 0.0
      %1016 = vmatprep.subr.mxu0 0.0
      %1017 = vmatpush1.msra.mxu0 0.0
      %1018 = vmatprep.subr.mxu0 0.0
      %1019 = vmatpush1.msra.mxu0 0.0
      %1020 = vmatprep.subr.mxu0 0.0
      %1021 = vmatpush1.msra.mxu0 0.0
      %1022 = vmatprep.subr.mxu0 0.0
      %1023 = vmatpush1.msra.mxu0 0.0
      %1024 = vmatprep.subr.mxu0 0.0
      %1025 = vmatpush1.msra.mxu0 0.0
      %1026 = vmatprep.subr.mxu0 0.0
      %1027 = vmatpush1.msra.mxu0 0.0
      %1028 = vmatprep.subr.mxu0 0.0
      %1029 = vmatpush1.msra.mxu0 0.0
      %1030 = vmatprep.subr.mxu0 0.0
      %1031 = vmatpush1.msra.mxu0 0.0
      %1032 = vmatprep.subr.mxu0 0.0
      %1033 = vmatpush1.msra.mxu0 0.0
      %1034 = vmatprep.subr.mxu0 0.0
      %1035 = vmatpush1.msra.mxu0 0.0
      %1036 = vmatprep.mubr.f32.mxu0 0.0
      %1037 = vmatmul.mubr.f32.gmra.mrb[0].mxu0 %v967
      %v1038 = vpop.f32.mrb[0].mxu0
      %v1039 = vadd.f32 0.0, %v1038
      %v1040 = vpop.f32.mrb[0].mxu0
      %v1041 = vadd.f32 0.0, %v1040
      %1042 = vmatprep.mubr.f32.mxu0 0.0
      %1043 = vmatmul.mubr.f32.gmra.mrb[0].mxu0 %v970
      %v1044 = vpop.f32.mrb[0].mxu0
      %v1045 = vadd.f32 0.0, %v1044
      %v1046 = vpop.f32.mrb[0].mxu0
      %v1047 = vadd.f32 0.0, %v1046
      %1048 = vdwg.mxu0
      %v1050 = vsel %vm882, %v878, 0
      %v1053 = vsel %vm882, %v879, 0
      %1055 = vmatprep.subr.mxu0 %v859
      %1056 = vmatpush1.msra.mxu0 %v858
      %1057 = vmatprep.subr.mxu0 %v861
      %1058 = vmatpush1.msra.mxu0 %v860
      %1059 = vmatprep.subr.mxu0 0.0
      %1060 = vmatpush1.msra.mxu0 0.0
      %1061 = vmatprep.subr.mxu0 0.0
      %1062 = vmatpush1.msra.mxu0 0.0
      %1063 = vmatprep.subr.mxu0 0.0
      %1064 = vmatpush1.msra.mxu0 0.0
      %1065 = vmatprep.subr.mxu0 0.0
      %1066 = vmatpush1.msra.mxu0 0.0
      %1067 = vmatprep.subr.mxu0 0.0
      %1068 = vmatpush1.msra.mxu0 0.0
      %1069 = vmatprep.subr.mxu0 0.0
      %1070 = vmatpush1.msra.mxu0 0.0
      %1071 = vmatprep.subr.mxu0 0.0
      %1072 = vmatpush1.msra.mxu0 0.0
      %1073 = vmatprep.subr.mxu0 0.0
      %1074 = vmatpush1.msra.mxu0 0.0
      %1075 = vmatprep.subr.mxu0 0.0
      %1076 = vmatpush1.msra.mxu0 0.0
      %1077 = vmatprep.subr.mxu0 0.0
      %1078 = vmatpush1.msra.mxu0 0.0
      %1079 = vmatprep.subr.mxu0 0.0
      %1080 = vmatpush1.msra.mxu0 0.0
      %1081 = vmatprep.subr.mxu0 0.0
      %1082 = vmatpush1.msra.mxu0 0.0
      %1083 = vmatprep.subr.mxu0 0.0
      %1084 = vmatpush1.msra.mxu0 0.0
      %1085 = vmatprep.subr.mxu0 0.0
      %1086 = vmatpush1.msra.mxu0 0.0
      %1087 = vmatprep.subr.mxu0 0.0
      %1088 = vmatpush1.msra.mxu0 0.0
      %1089 = vmatprep.subr.mxu0 0.0
      %1090 = vmatpush1.msra.mxu0 0.0
      %1091 = vmatprep.subr.mxu0 0.0
      %1092 = vmatpush1.msra.mxu0 0.0
      %1093 = vmatprep.subr.mxu0 0.0
      %1094 = vmatpush1.msra.mxu0 0.0
      %1095 = vmatprep.subr.mxu0 0.0
      %1096 = vmatpush1.msra.mxu0 0.0
      %1097 = vmatprep.subr.mxu0 0.0
      %1098 = vmatpush1.msra.mxu0 0.0
      %1099 = vmatprep.subr.mxu0 0.0
      %1100 = vmatpush1.msra.mxu0 0.0
      %1101 = vmatprep.subr.mxu0 0.0
      %1102 = vmatpush1.msra.mxu0 0.0
      %1103 = vmatprep.subr.mxu0 0.0
      %1104 = vmatpush1.msra.mxu0 0.0
      %1105 = vmatprep.subr.mxu0 0.0
      %1106 = vmatpush1.msra.mxu0 0.0
      %1107 = vmatprep.subr.mxu0 0.0
      %1108 = vmatpush1.msra.mxu0 0.0
      %1109 = vmatprep.subr.mxu0 0.0
      %1110 = vmatpush1.msra.mxu0 0.0
      %1111 = vmatprep.subr.mxu0 0.0
      %1112 = vmatpush1.msra.mxu0 0.0
      %1113 = vmatprep.subr.mxu0 0.0
      %1114 = vmatpush1.msra.mxu0 0.0
      %1115 = vmatprep.subr.mxu0 0.0
      %1116 = vmatpush1.msra.mxu0 0.0
      %1117 = vmatprep.subr.mxu0 0.0
      %1118 = vmatpush1.msra.mxu0 0.0
      %1119 = vmatprep.mubr.f32.mxu0 0.0
      %1120 = vmatmul.mubr.f32.gmra.mrb[0].mxu0 %v1050
      %v1121 = vpop.f32.mrb[0].mxu0
      %v1122 = vadd.f32 0.0, %v1121
      %v1123 = vpop.f32.mrb[0].mxu0
      %v1124 = vadd.f32 0.0, %v1123
      %1125 = vmatprep.mubr.f32.mxu0 0.0
      %1126 = vmatmul.mubr.f32.gmra.mrb[0].mxu0 %v1053
      %v1127 = vpop.f32.mrb[0].mxu0
      %v1128 = vadd.f32 0.0, %v1127
      %v1129 = vpop.f32.mrb[0].mxu0
      %v1130 = vadd.f32 0.0, %v1129
      %1131 = vdwg.mxu0
      %v1133 = vsel %vm882, %v880, 0
      %v1136 = vsel %vm882, %v881, 0
      %1138 = vmatprep.subr.mxu0 %v863
      %1139 = vmatpush1.msra.mxu0 %v862
      %1140 = vmatprep.subr.mxu0 %v865
      %1141 = vmatpush1.msra.mxu0 %v864
      %1142 = vmatprep.subr.mxu0 0.0
      %1143 = vmatpush1.msra.mxu0 0.0
      %1144 = vmatprep.subr.mxu0 0.0
      %1145 = vmatpush1.msra.mxu0 0.0
      %1146 = vmatprep.subr.mxu0 0.0
      %1147 = vmatpush1.msra.mxu0 0.0
      %1148 = vmatprep.subr.mxu0 0.0
      %1149 = vmatpush1.msra.mxu0 0.0
      %1150 = vmatprep.subr.mxu0 0.0
      %1151 = vmatpush1.msra.mxu0 0.0
      %1152 = vmatprep.subr.mxu0 0.0
      %1153 = vmatpush1.msra.mxu0 0.0
      %1154 = vmatprep.subr.mxu0 0.0
      %1155 = vmatpush1.msra.mxu0 0.0
      %1156 = vmatprep.subr.mxu0 0.0
      %1157 = vmatpush1.msra.mxu0 0.0
      %1158 = vmatprep.subr.mxu0 0.0
      %1159 = vmatpush1.msra.mxu0 0.0
      %1160 = vmatprep.subr.mxu0 0.0
      %1161 = vmatpush1.msra.mxu0 0.0
      %1162 = vmatprep.subr.mxu0 0.0
      %1163 = vmatpush1.msra.mxu0 0.0
      %1164 = vmatprep.subr.mxu0 0.0
      %1165 = vmatpush1.msra.mxu0 0.0
      %1166 = vmatprep.subr.mxu0 0.0
      %1167 = vmatpush1.msra.mxu0 0.0
      %1168 = vmatprep.subr.mxu0 0.0
      %1169 = vmatpush1.msra.mxu0 0.0
      %1170 = vmatprep.subr.mxu0 0.0
      %1171 = vmatpush1.msra.mxu0 0.0
      %1172 = vmatprep.subr.mxu0 0.0
      %1173 = vmatpush1.msra.mxu0 0.0
      %1174 = vmatprep.subr.mxu0 0.0
      %1175 = vmatpush1.msra.mxu0 0.0
      %1176 = vmatprep.subr.mxu0 0.0
      %1177 = vmatpush1.msra.mxu0 0.0
      %1178 = vmatprep.subr.mxu0 0.0
      %1179 = vmatpush1.msra.mxu0 0.0
      %1180 = vmatprep.subr.mxu0 0.0
      %1181 = vmatpush1.msra.mxu0 0.0
      %1182 = vmatprep.subr.mxu0 0.0
      %1183 = vmatpush1.msra.mxu0 0.0
      %1184 = vmatprep.subr.mxu0 0.0
      %1185 = vmatpush1.msra.mxu0 0.0
      %1186 = vmatprep.subr.mxu0 0.0
      %1187 = vmatpush1.msra.mxu0 0.0
      %1188 = vmatprep.subr.mxu0 0.0
      %1189 = vmatpush1.msra.mxu0 0.0
      %1190 = vmatprep.subr.mxu0 0.0
      %1191 = vmatpush1.msra.mxu0 0.0
      %1192 = vmatprep.subr.mxu0 0.0
      %1193 = vmatpush1.msra.mxu0 0.0
      %1194 = vmatprep.subr.mxu0 0.0
      %1195 = vmatpush1.msra.mxu0 0.0
      %1196 = vmatprep.subr.mxu0 0.0
      %1197 = vmatpush1.msra.mxu0 0.0
      %1198 = vmatprep.subr.mxu0 0.0
      %1199 = vmatpush1.msra.mxu0 0.0
      %1200 = vmatprep.subr.mxu0 0.0
      %1201 = vmatpush1.msra.mxu0 0.0
      %1202 = vmatprep.mubr.f32.mxu0 0.0
      %1203 = vmatmul.mubr.f32.gmra.mrb[0].mxu0 %v1133
      %v1204 = vpop.f32.mrb[0].mxu0
      %v1205 = vadd.f32 0.0, %v1204
      %v1206 = vpop.f32.mrb[0].mxu0
      %v1207 = vadd.f32 0.0, %v1206
      %1208 = vmatprep.mubr.f32.mxu0 0.0
      %1209 = vmatmul.mubr.f32.gmra.mrb[0].mxu0 %v1136
      %v1210 = vpop.f32.mrb[0].mxu0
      %v1211 = vadd.f32 0.0, %v1210
      %v1212 = vpop.f32.mrb[0].mxu0
      %v1213 = vadd.f32 0.0, %v1212
      %1214 = vdwg.mxu0
      %v1215 = vmul.f32 %v719, %v956
      %v1216 = vmul.f32 %v720, %v958
      %v1217 = vmul.f32 %v721, %v962
      %v1218 = vmul.f32 %v722, %v964
      %v1219 = vmul.f32 %v723, %v1039
      %v1220 = vmul.f32 %v724, %v1041
      %v1221 = vmul.f32 %v725, %v1045
      %v1222 = vmul.f32 %v726, %v1047
      %v1223 = vmul.f32 %v727, %v1122
      %v1224 = vmul.f32 %v728, %v1124
      %v1225 = vmul.f32 %v729, %v1128
      %v1226 = vmul.f32 %v730, %v1130
      %v1227 = vmul.f32 %v731, %v1205
      %v1228 = vmul.f32 %v732, %v1207
      %v1229 = vmul.f32 %v733, %v1211
      %v1230 = vmul.f32 %v734, %v1213
      %v1231 = vadd.f32 %v1215, %v1217
      %v1232 = vrot.slane %v1231, 4
      %v1233 = vadd.f32 %v1231, %v1232
      %v1234 = vrot.slane %v1233, 2
      %v1235 = vadd.f32 %v1233, %v1234
      %v1236 = vrot.slane %v1235, 1
      %v1237 = vadd.f32 %v1235, %v1236
      %v1238 = vadd.f32 %v1216, %v1218
      %v1239 = vrot.slane %v1238, 4
      %v1240 = vadd.f32 %v1238, %v1239
      %v1241 = vrot.slane %v1240, 2
      %v1242 = vadd.f32 %v1240, %v1241
      %v1243 = vrot.slane %v1242, 1
      %v1244 = vadd.f32 %v1242, %v1243
      %v1245 = vadd.f32 %v1219, %v1221
      %v1246 = vrot.slane %v1245, 4
      %v1247 = vadd.f32 %v1245, %v1246
      %v1248 = vrot.slane %v1247, 2
      %v1249 = vadd.f32 %v1247, %v1248
      %v1250 = vrot.slane %v1249, 1
      %v1251 = vadd.f32 %v1249, %v1250
      %v1252 = vadd.f32 %v1220, %v1222
      %v1253 = vrot.slane %v1252, 4
      %v1254 = vadd.f32 %v1252, %v1253
      %v1255 = vrot.slane %v1254, 2
      %v1256 = vadd.f32 %v1254, %v1255
      %v1257 = vrot.slane %v1256, 1
      %v1258 = vadd.f32 %v1256, %v1257
      %v1259 = vadd.f32 %v1223, %v1225
      %v1260 = vrot.slane %v1259, 4
      %v1261 = vadd.f32 %v1259, %v1260
      %v1262 = vrot.slane %v1261, 2
      %v1263 = vadd.f32 %v1261, %v1262
      %v1264 = vrot.slane %v1263, 1
      %v1265 = vadd.f32 %v1263, %v1264
      %v1266 = vadd.f32 %v1224, %v1226
      %v1267 = vrot.slane %v1266, 4
      %v1268 = vadd.f32 %v1266, %v1267
      %v1269 = vrot.slane %v1268, 2
      %v1270 = vadd.f32 %v1268, %v1269
      %v1271 = vrot.slane %v1270, 1
      %v1272 = vadd.f32 %v1270, %v1271
      %v1273 = vadd.f32 %v1227, %v1229
      %v1274 = vrot.slane %v1273, 4
      %v1275 = vadd.f32 %v1273, %v1274
      %v1276 = vrot.slane %v1275, 2
      %v1277 = vadd.f32 %v1275, %v1276
      %v1278 = vrot.slane %v1277, 1
      %v1279 = vadd.f32 %v1277, %v1278
      %v1280 = vadd.f32 %v1228, %v1230
      %v1281 = vrot.slane %v1280, 4
      %v1282 = vadd.f32 %v1280, %v1281
      %v1283 = vrot.slane %v1282, 2
      %v1284 = vadd.f32 %v1282, %v1283
      %v1285 = vrot.slane %v1284, 1
      %v1286 = vadd.f32 %v1284, %v1285
      %vm1295 = vcmask 1041409
      %v1296 = vsel %vm1295, %v1251, %v1237
      %vm1297 = vcmask 1042434
      %v1298 = vsel %vm1297, %v1265, %v1296
      %vm1299 = vcmask 1043459
      %v1300 = vsel %vm1299, %v1279, %v1298
      %v1301 = vsel %vm1295, %v1258, %v1244
      %v1302 = vsel %vm1297, %v1272, %v1301
      %v1303 = vsel %vm1299, %v1286, %v1302
      %1306 = vrot.lane.b32.xlu0 %v1300, 17
      %v1307 = vpop.permute.xlu0 %1306
      %1308 = vrot.lane.b32.xlu0 %v1303, 17
      %v1309 = vpop.permute.xlu0 %1308
      %v1310 = vsel %vm315, %v1307, %v1309
      %v1311 = vsel %vm315, %v1309, %v1307
      %v1312 = vmul.f32 %v1311, %v321
      %v1313 = vmul.f32 %v1310, %v325
      %1314 = vst [vmem:[#allocation3] sm:$0xf] %v1312
      %1315 = vst [vmem:[#allocation3 + $0x8] sm:$0xf] %v1313
      %1316 = vrot.lane.b32.xlu0 %v1300, 16
      %v1317 = vpop.permute.xlu0 %1316
      %1318 = vrot.lane.b32.xlu0 %v1303, 16
      %v1319 = vpop.permute.xlu0 %1318
      %v1320 = vsel %vm334, %v1317, %v1319
      %v1321 = vsel %vm334, %v1319, %v1317
      %v1322 = vmul.f32 %v1321, %v340
      %v1323 = vmul.f32 %v1320, %v344
      %v1326 = vrot.slane %v1322, 4
      %v1327 = vrot.slane %v1323, 4
      %1330 = vst [vmem:[#allocation3] sm:$0xf0] %v1326
      %1331 = vst [vmem:[#allocation3 + $0x8] sm:$0xf0] %v1327
      %1332 = vrot.lane.b32.xlu0 %v1300, 15
      %v1333 = vpop.permute.xlu0 %1332
      %1334 = vrot.lane.b32.xlu0 %v1303, 15
      %v1335 = vpop.permute.xlu0 %1334
      %v1336 = vsel %vm359, %v1333, %v1335
      %v1337 = vsel %vm359, %v1335, %v1333
      %v1338 = vmul.f32 %v1337, %v365
      %v1339 = vmul.f32 %v1336, %v369
      %1340 = vst [vmem:[#allocation3 + $0x10] sm:$0xf] %v1338
      %1341 = vst [vmem:[#allocation3 + $0x18] sm:$0xf] %v1339
      %1342 = vrot.lane.b32.xlu0 %v1300, 1
      %v1343 = vpop.permute.xlu0 %1342
      %1344 = vrot.lane.b32.xlu0 %v1303, 1
      %v1345 = vpop.permute.xlu0 %1344
      %v1346 = vsel %vm378, %v1343, %v1345
      %v1347 = vsel %vm378, %v1345, %v1343
      %v1348 = vmul.f32 %v1347, %v384
      %v1349 = vmul.f32 %v1346, %v388
      %v1352 = vrot.slane %v1348, 4
      %v1353 = vrot.slane %v1349, 4
      %1356 = vst [vmem:[#allocation3 + $0x10] sm:$0xf0] %v1352
      %1357 = vst [vmem:[#allocation3 + $0x18] sm:$0xf0] %v1353
      %1358 = vst [vmem:[#allocation3 + $0x20] sm:$0xf] %v1300
      %1359 = vst [vmem:[#allocation3 + $0x28] sm:$0xf] %v1303
      %1360 = vrot.lane.b32.xlu0 %v1300, 127
      %v1361 = vpop.permute.xlu0 %1360
      %1362 = vrot.lane.b32.xlu0 %v1303, 127
      %v1363 = vpop.permute.xlu0 %1362
      %v1364 = vsel %vm405, %v1361, %v1363
      %v1365 = vsel %vm405, %v1363, %v1361
      %v1366 = vmul.f32 %v1364, %v411
      %v1367 = vmul.f32 %v1365, %v415
      %v1370 = vrot.slane %v1366, 4
      %v1371 = vrot.slane %v1367, 4
      %1374 = vst [vmem:[#allocation3 + $0x20] sm:$0xf0] %v1370
      %1375 = vst [vmem:[#allocation3 + $0x28] sm:$0xf0] %v1371
      %1376 = vrot.lane.b32.xlu0 %v1300, 113
      %v1377 = vpop.permute.xlu0 %1376
      %1378 = vrot.lane.b32.xlu0 %v1303, 113
      %v1379 = vpop.permute.xlu0 %1378
      %v1380 = vsel %vm430, %v1377, %v1379
      %v1381 = vsel %vm430, %v1379, %v1377
      %v1382 = vmul.f32 %v1380, %v436
      %v1383 = vmul.f32 %v1381, %v440
      %1384 = vst [vmem:[#allocation3 + $0x30] sm:$0xf] %v1382
      %1385 = vst [vmem:[#allocation3 + $0x38] sm:$0xf] %v1383
      %1386 = vrot.lane.b32.xlu0 %v1300, 112
      %v1387 = vpop.permute.xlu0 %1386
      %1388 = vrot.lane.b32.xlu0 %v1303, 112
      %v1389 = vpop.permute.xlu0 %1388
      %v1390 = vsel %vm449, %v1387, %v1389
      %v1391 = vsel %vm449, %v1389, %v1387
      %v1392 = vmul.f32 %v1390, %v455
      %v1393 = vmul.f32 %v1391, %v459
      %v1396 = vrot.slane %v1392, 4
      %v1397 = vrot.slane %v1393, 4
      %1400 = vst [vmem:[#allocation3 + $0x30] sm:$0xf0] %v1396
      %1401 = vst [vmem:[#allocation3 + $0x38] sm:$0xf0] %v1397
      %1402 = vrot.lane.b32.xlu0 %v1300, 111
      %v1403 = vpop.permute.xlu0 %1402
      %1404 = vrot.lane.b32.xlu0 %v1303, 111
      %v1405 = vpop.permute.xlu0 %1404
      %v1406 = vsel %vm474, %v1403, %v1405
      %v1407 = vsel %vm474, %v1405, %v1403
      %v1408 = vmul.f32 %v1406, %v480
      %v1409 = vmul.f32 %v1407, %v484
      %1410 = vst [vmem:[#allocation3 + $0x40] sm:$0xf] %v1408
      %1411 = vst [vmem:[#allocation3 + $0x48] sm:$0xf] %v1409
      %v1412 = vld [vmem:[%s1] sm:$0xf]
      %v1413 = vld [vmem:[#allocation3] sm:$0xff]
      %v1414 = vld [vmem:[#allocation3 + $0x8] sm:$0xff]
      %v1415 = vld [vmem:[#allocation3 + $0x10] sm:$0xff]
      %v1416 = vld [vmem:[#allocation3 + $0x18] sm:$0xff]
      %v1417 = vld [vmem:[#allocation3 + $0x20] sm:$0xff]
      %v1418 = vld [vmem:[#allocation3 + $0x28] sm:$0xff]
      %v1419 = vld [vmem:[#allocation3 + $0x30] sm:$0xff]
      %v1420 = vld [vmem:[#allocation3 + $0x38] sm:$0xff]
      %v1421 = vld [vmem:[#allocation3 + $0x40] sm:$0xf]
      %v1422 = vld [vmem:[#allocation3 + $0x48] sm:$0xf]
      %v1423 = vpack.c.bf16 %v1415, %v1413
      %v1424 = vpack.c.bf16 %v1416, %v1414
      %v1425 = vpack.c.bf16 %v1419, %v1417
      %v1426 = vpack.c.bf16 %v1420, %v1418
      %v1427 = vpack.c.bf16 %v1421, %v1421
      %v1428 = vpack.c.bf16 %v1422, %v1422
      %v1429 = vld [vmem:[%s2] sm:$0xff]
      %1431 = vset.pattern.permute.xlu0 0
      %1432 = vperm.xlu0 %1431, %v1429
      %v1433 = vpop.permute.xlu0 %1432
      %v1436 = vsel %vm506, %v1412, 0
      %v1439 = vsel %vm510, %v1427, 0
      %v1442 = vsel %vm510, %v1428, 0
      %1444 = vmatprep.subr.bf16.mxu0 %v1424
      %1445 = vmatpush1.bf16.msra.mxu0 %v1423
      %1446 = vmatprep.subr.bf16.mxu0 %v1426
      %1447 = vmatpush1.bf16.msra.mxu0 %v1425
      %1448 = vmatprep.subr.bf16.mxu0 %v1442
      %1449 = vmatpush1.bf16.msra.mxu0 %v1439
      %1450 = vmatprep.subr.bf16.mxu0 0
      %1451 = vmatpush1.bf16.msra.mxu0 0
      %1452 = vmatprep.subr.bf16.mxu0 0
      %1453 = vmatpush1.bf16.msra.mxu0 0
      %1454 = vmatprep.subr.bf16.mxu0 0
      %1455 = vmatpush1.bf16.msra.mxu0 0
      %1456 = vmatprep.subr.bf16.mxu0 0
      %1457 = vmatpush1.bf16.msra.mxu0 0
      %1458 = vmatprep.subr.bf16.mxu0 0
      %1459 = vmatpush1.bf16.msra.mxu0 0
      %1460 = vmatprep.subr.bf16.mxu0 0
      %1461 = vmatpush1.bf16.msra.mxu0 0
      %1462 = vmatprep.subr.bf16.mxu0 0
      %1463 = vmatpush1.bf16.msra.mxu0 0
      %1464 = vmatprep.subr.bf16.mxu0 0
      %1465 = vmatpush1.bf16.msra.mxu0 0
      %1466 = vmatprep.subr.bf16.mxu0 0
      %1467 = vmatpush1.bf16.msra.mxu0 0
      %1468 = vmatprep.subr.bf16.mxu0 0
      %1469 = vmatpush1.bf16.msra.mxu0 0
      %1470 = vmatprep.subr.bf16.mxu0 0
      %1471 = vmatpush1.bf16.msra.mxu0 0
      %1472 = vmatprep.subr.bf16.mxu0 0
      %1473 = vmatpush1.bf16.msra.mxu0 0
      %1474 = vmatprep.subr.bf16.mxu0 0
      %1475 = vmatpush1.bf16.msra.mxu0 0
      %1476 = vmatprep.mubr.bf16.mxu0 0
      %1477 = vmatmul.mubr.bf16.gmra.mrb[0].mxu0 %v1436
      %v1478 = vpop.f32.mrb[0].mxu0
      %v1479 = vadd.f32 %v1433, %v1478
      %v1480 = vpop.f32.mrb[0].mxu0
      %v1481 = vadd.f32 %v1433, %v1480
      %v1482 = vpop.f32.mrb[0].mxu0
      %v1483 = vpop.f32.mrb[0].mxu0
      %1484 = vdwg.mxu0
      %1485 = vst [vmem:[%s298] sm:$0xff] %v1479
      %1486 = vst [vmem:[%s298 + $0x8] sm:$0xff] %v1481
      %p1487 = scmp.lt.s32.totalorder %s18, 1
      %s1488 = scalar_select %p1487, %s18, 1
      %s1489 = smul.addr %s1488, 2
      %s1490 = smul.addr %s1489, 8
      %s1491 = scalar_lea.vmem %s7, %s1490
      // Predicated region
      $region49: #{conv2d_deformable_forward.1} parent=47 // pred_check
        %p1492 = pneg %p193
      $region50: #{conv2d_deformable_forward.1} parent=47 // pred_check_branch
        %1494 = sbr.rel (%p1492) target = $region52
      $region51: #{conv2d_deformable_forward.1} parent=47 // pred_region
        _
      $region52: #{conv2d_deformable_forward.1} parent=47 // pred_fallthru
        _
    $region48: #{conv2d_deformable_forward.1} parent=5 // pred_fallthru
      _
    %p1495 = scmp.le.s32.totalorder 2, %s13
    // Predicated region
    $region53: #{conv2d_deformable_forward.1} parent=5 // pred_check
      %p1496 = pneg %p1495
    $region54: #{conv2d_deformable_forward.1} parent=5 // pred_check_branch
      %1498 = sbr.rel (%p1496) target = $region56
    $region55: #{conv2d_deformable_forward.1} parent=5 // pred_region
      %s1499 = ssub.s32 %s13, 2
      // Predicated region
      $region57: #{conv2d_deformable_forward.1} parent=55 // pred_check
        %p1500 = pneg %p199
      $region58: #{conv2d_deformable_forward.1} parent=55 // pred_check_branch
        %1502 = sbr.rel (%p1500) target = $region60
      $region59: #{conv2d_deformable_forward.1} parent=55 // pred_region
        %p1503 = scmp.lt.s32.totalorder %s19, 1
        %s1504 = scalar_select %p1503, %s19, 1
        %s1505 = smul.addr %s1504, 2
        %s1506 = smul.addr %s1505, 8
        %s1507 = scalar_lea.vmem %s7, %s1506
      $region60: #{conv2d_deformable_forward.1} parent=55 // pred_fallthru
        _
    $region56: #{conv2d_deformable_forward.1} parent=5 // pred_fallthru
      _
  $region6: #{conv2d_deformable_forward.1} parent=0 // loop_footer
    %s17 = sadd.s32 1, %s13
  $region7: #{conv2d_deformable_forward.1} parent=0 // loop_footer_branch
    %12 = sbr.rel target = $region3
  $region8: #{conv2d_deformable_forward.1} parent=0 // loop_exit
    _

</llo_original>
